<compile_context>
chip_gen: v7x
topology: tpu7x:2x2x1
jax: 0.10.0
libtpu: 0.0.40
codegen_flags: <defaults>
</compile_context>

<pallas_src>
import jax
import jax.numpy as jnp
from jax import lax
from jax.experimental import pallas as pl
from jax.experimental.pallas import tpu as pltpu


def encoder_spatial_kernel(xt_ref, xtt_ref, wcat_ref, b_ref, inp_ref, enc_ref):
    # xt_ref  : (1, T, N, D)  agents on sublanes, features on lanes
    # xtt_ref : (1, T, D, N)  features on sublanes, agents on lanes
    # wcat_ref: (2D, E)       [Wg^T ; Wr^T]   (prepared once)
    # b_ref   : (1, E)        GCNConv bias
    xt = xt_ref[0]                         # (T, N, D)
    xtt = xtt_ref[0]                       # (T, D, N)
    T, N, D = xt.shape
    E = wcat_ref.shape[1]

    # ---- dense per-time-step adjacency: adj[t, i, j] = min(1/||x_i - x_j||, 1)
    # rsqrt(0) = +inf, min(+inf, 1) = 1  -> reproduces both the zero-distance
    # clamp (1e-6 -> weight 1) and the GCN self-loop weight (diag == 1.0).
    sq = jnp.zeros((T, N, N), jnp.float32)
    for f in range(D):                      # D is tiny & static -> unrolled
        vi = xt[:, :, f:f + 1]              # (T, N, 1)  agent i on sublanes
        vj = xtt[:, f:f + 1, :]             # (T, 1, N)  agent j on lanes
        d = vi - vj                         # (T, N, N)
        sq = sq + d * d
    adj = jnp.minimum(lax.rsqrt(sq), 1.0)   # symmetric, diag == 1.0

    # ---- symmetric GCN normalisation; only agent 0 (the returned target).
    deg = jnp.sum(adj, axis=1, keepdims=True)           # (T, 1, N), deg >= 1
    dinv = lax.rsqrt(deg)                                # EUP, no div-by-0
    # coef[t, s] = dinv[t,0] * adj[t,s,0] * dinv[t,s]    (adj row0 == col0)
    coef = dinv[:, :, 0:1] * adj[:, 0:1, :] * dinv       # (T, 1, N)

    x0 = xt[:, 0, :]                                     # (T, D) agent-0 feats

    # ---- aggregate raw features, then apply the fused projection
    #      enc = (sum_s coef_s * x_s) @ Wg^T + x0 @ Wr^T + b, then ReLU.
    acc = jnp.zeros((T, E), jnp.float32)
    for f in range(D):
        a_f = jnp.sum(coef * xtt[:, f:f + 1, :], axis=2)           # (T, 1)
        acc = acc + a_f * wcat_ref[f:f + 1, :]                      # GCN row f
        acc = acc + x0[:, f:f + 1] * wcat_ref[D + f:D + f + 1, :]   # residual
    enc = jnp.maximum(acc + b_ref[...], 0.0)

    inp_ref[0] = x0.astype(inp_ref.dtype)                # pass-through "inputs"
    enc_ref[0] = enc.astype(enc_ref.dtype)


def prepare_params(w_gcn, b_gcn, w_res):
    """One-time glue (hoisted out of the per-call path): fuse GCN + residual
    projection weights into a single (2D, E) matrix and reshape the bias."""
    w_cat = jnp.concatenate([w_gcn.T, w_res.T], axis=0).astype(jnp.float32)
    bias = b_gcn.reshape(1, -1).astype(jnp.float32)
    return w_cat, bias


def encoder_spatial_forward(x, prepared):
    """Pallas equivalent of EncoderSpatial.forward.

    x        : (B, N, T, D)  fixed-N batch of agent trajectories.
    prepared : output of prepare_params.
    returns  : (inputs [B, T, D], enc_sp [B, T, E])
    """
    w_cat, bias = prepared
    B, N, T, D = x.shape
    E = w_cat.shape[1]

    # Layout plumbing in the wrapper (cheap XLA transposes) so the kernel never
    # needs in-body relayouts: agents-on-lanes AND agents-on-sublanes views.
    xt = jnp.transpose(x, (0, 2, 1, 3))    # (B, T, N, D)
    xtt = jnp.transpose(x, (0, 2, 3, 1))   # (B, T, D, N)

    inputs, enc_sp = pl.pallas_call(
        encoder_spatial_kernel,
        out_shape=(
            jax.ShapeDtypeStruct((B, T, D), x.dtype),
            jax.ShapeDtypeStruct((B, T, E), x.dtype),
        ),
        grid=(B,),
        in_specs=[
            pl.BlockSpec((1, T, N, D), lambda b: (b, 0, 0, 0)),
            pl.BlockSpec((1, T, D, N), lambda b: (b, 0, 0, 0)),
            pl.BlockSpec((2 * D, E), lambda b: (0, 0)),   # resident weights
            pl.BlockSpec((1, E), lambda b: (0, 0)),       # resident bias
        ],
        out_specs=(
            pl.BlockSpec((1, T, D), lambda b: (b, 0, 0)),
            pl.BlockSpec((1, T, E), lambda b: (b, 0, 0)),
        ),
        compiler_params=pltpu.CompilerParams(
            dimension_semantics=("parallel",)),   # batch axis -> megacore
    )(xt, xtt, w_cat, bias)
    return inputs, enc_sp


def encoder_spatial_reference(x, params):
    """Pure-JAX mirror of the PyTorch/PyG path (explicit edge list + scatter)."""
    w_gcn, b_gcn, w_res = params
    B, N, T, D = x.shape
    E = w_gcn.shape[0]
    M = B * T * N

    # preprocess: node features in (sample, time, agent) order.
    g = jnp.swapaxes(x, 1, 2).reshape(M, D)

    # fully-connected edges (no self loops) inside each (sample, time) group.
    src, dst = [], []
    offset = 0
    for _b in range(B):
        for _t in range(T):
            for i in range(N):
                for j in range(N):
                    if i != j:
                        src.append(offset + i)
                        dst.append(offset + j)
            offset += N
    src = jnp.array(src, jnp.int32)
    dst = jnp.array(dst, jnp.int32)

    # distance weights: min(1/||vi - vj||, 1), zero distance -> 1e-6.
    delta = g[src] - g[dst]
    dd = jnp.linalg.norm(delta, axis=1)
    dd = jnp.where(dd == 0.0, 1e-6, dd)
    w = jnp.minimum(1.0 / dd, 1.0)

    # GCNConv(add_self_loops=True): append self loops with weight 1.0.
    loops = jnp.arange(M, dtype=jnp.int32)
    src_l = jnp.concatenate([src, loops])
    dst_l = jnp.concatenate([dst, loops])
    w_l = jnp.concatenate([w, jnp.ones((M,), jnp.float32)])

    deg = jax.ops.segment_sum(w_l, dst_l, num_segments=M)
    dinv = deg ** -0.5
    norm = dinv[src_l] * w_l * dinv[dst_l]

    xlin = g @ w_gcn.T                                    # (M, E)
    enc = jax.ops.segment_sum(norm[:, None] * xlin[src_l], dst_l,
                              num_segments=M) + b_gcn
    res = g @ w_res.T
    out = jax.nn.relu(enc + res)                          # (M, E)

    enc_sp = out.reshape(B, T, N, E)[:, :, 0, :]          # agent 0 only
    inputs = x[:, 0, :, :]
    return inputs, enc_sp


if __name__ == "__main__":
    # EncoderSpatial(input_size=2, embedding_size=8); B=2 samples, N=4 agents,
    # T=16 time steps.
    B, N, T, D, E = 2, 4, 16, 2, 8
    key = jax.random.PRNGKey(0)
    kx, k1, k2, k3 = jax.random.split(key, 4)

    x = jax.random.normal(kx, (B, N, T, D), jnp.float32)

    bound = 1.0 / jnp.sqrt(jnp.float32(D))
    w_gcn = jax.random.uniform(k1, (E, D), jnp.float32, -bound, bound)  # GCNConv.lin
    b_gcn = jax.random.uniform(k2, (E,), jnp.float32, -bound, bound)    # GCNConv.bias
    w_res = jax.random.uniform(k3, (E, D), jnp.float32, -bound, bound)  # residual Linear

    prepared = prepare_params(w_gcn, b_gcn, w_res)          # one-time glue
    inputs, enc_sp = encoder_spatial_forward(x, prepared)
    jax.block_until_ready((inputs, enc_sp))

    inp_expect, enc_expect = encoder_spatial_reference(x, (w_gcn, b_gcn, w_res))
    assert inputs.shape == (B, T, D) and enc_sp.shape == (B, T, E)
    assert jnp.allclose(inputs, inp_expect, atol=1e-5, rtol=1e-5)
    assert jnp.allclose(enc_sp, enc_expect, atol=1e-4, rtol=1e-4)

    print("KERNEL_OK")
</pallas_src>

<mosaic_0001>
module attributes {stable_mosaic.version = 11 : i64} {
  func.func @encoder_spatial_kernel(%arg0: i32, %arg1: memref<1x16x4x2xf32, #tpu.memory_space<vmem>>, %arg2: memref<1x16x2x4xf32, #tpu.memory_space<vmem>>, %arg3: memref<4x8xf32, #tpu.memory_space<vmem>>, %arg4: memref<1x8xf32, #tpu.memory_space<vmem>>, %arg5: memref<1x16x2xf32, #tpu.memory_space<vmem>>, %arg6: memref<1x16x8xf32, #tpu.memory_space<vmem>>) attributes {dimension_semantics = [#tpu.dimension_semantics<parallel>], iteration_bounds = array<i64: 2>, scalar_prefetch = 0 : i64, scratch_operands = 0 : i64, tpu.core_type = #tpu.core_type<tc>, window_params = [{transform_indices = @transform_0, window_bounds = array<i64: 1, 16, 4, 2>}, {transform_indices = @transform_1, window_bounds = array<i64: 1, 16, 2, 4>}, {pipeline_mode = #tpu.pipeline_mode<synchronous>, transform_indices = @transform_2, window_bounds = array<i64: 4, 8>}, {pipeline_mode = #tpu.pipeline_mode<synchronous>, transform_indices = @transform_3, window_bounds = array<i64: 1, 8>}, {transform_indices = @transform_4, window_bounds = array<i64: 1, 16, 2>}, {transform_indices = @transform_5, window_bounds = array<i64: 1, 16, 8>}]} {
    %c0 = arith.constant 0 : index
    %c0_0 = arith.constant 0 : index
    %c0_1 = arith.constant 0 : index
    %c0_2 = arith.constant 0 : index
    %0 = vector.load %arg1[%c0, %c0_0, %c0_1, %c0_2] : memref<1x16x4x2xf32, #tpu.memory_space<vmem>>, vector<1x16x4x2xf32>
    %1 = vector.shape_cast %0 : vector<1x16x4x2xf32> to vector<16x4x2xf32>
    %c0_3 = arith.constant 0 : index
    %c0_4 = arith.constant 0 : index
    %c0_5 = arith.constant 0 : index
    %c0_6 = arith.constant 0 : index
    %2 = vector.load %arg2[%c0_3, %c0_4, %c0_5, %c0_6] : memref<1x16x2x4xf32, #tpu.memory_space<vmem>>, vector<1x16x2x4xf32>
    %3 = vector.shape_cast %2 : vector<1x16x2x4xf32> to vector<16x2x4xf32>
    %cst = arith.constant 0.000000e+00 : f32
    %4 = vector.broadcast %cst : f32 to vector<16x4x4xf32>
    %5 = vector.extract_strided_slice %1 {offsets = [0, 0, 0], sizes = [16, 4, 1], strides = [1, 1, 1]} : vector<16x4x2xf32> to vector<16x4x1xf32>
    %6 = vector.extract_strided_slice %3 {offsets = [0, 0, 0], sizes = [16, 1, 4], strides = [1, 1, 1]} : vector<16x2x4xf32> to vector<16x1x4xf32>
    %7 = vector.broadcast %5 : vector<16x4x1xf32> to vector<16x4x4xf32>
    %8 = vector.broadcast %6 : vector<16x1x4xf32> to vector<16x4x4xf32>
    %9 = arith.subf %7, %8 : vector<16x4x4xf32>
    %10 = arith.mulf %9, %9 : vector<16x4x4xf32>
    %11 = arith.addf %4, %10 : vector<16x4x4xf32>
    %12 = vector.extract_strided_slice %1 {offsets = [0, 0, 1], sizes = [16, 4, 1], strides = [1, 1, 1]} : vector<16x4x2xf32> to vector<16x4x1xf32>
    %13 = vector.extract_strided_slice %3 {offsets = [0, 1, 0], sizes = [16, 1, 4], strides = [1, 1, 1]} : vector<16x2x4xf32> to vector<16x1x4xf32>
    %14 = vector.broadcast %12 : vector<16x4x1xf32> to vector<16x4x4xf32>
    %15 = vector.broadcast %13 : vector<16x1x4xf32> to vector<16x4x4xf32>
    %16 = arith.subf %14, %15 : vector<16x4x4xf32>
    %17 = arith.mulf %16, %16 : vector<16x4x4xf32>
    %18 = arith.addf %11, %17 : vector<16x4x4xf32>
    %19 = math.rsqrt %18 : vector<16x4x4xf32>
    %cst_7 = arith.constant 1.000000e+00 : f32
    %20 = vector.broadcast %cst_7 : f32 to vector<16x4x4xf32>
    %21 = arith.minimumf %19, %20 : vector<16x4x4xf32>
    %cst_8 = arith.constant dense<0.000000e+00> : vector<16x4xf32>
    %22 = vector.multi_reduction <add>, %21, %cst_8 [1] : vector<16x4x4xf32> to vector<16x4xf32>
    %23 = vector.shape_cast %22 : vector<16x4xf32> to vector<16x1x4xf32>
    %24 = math.rsqrt %23 : vector<16x1x4xf32>
    %25 = vector.extract_strided_slice %24 {offsets = [0, 0, 0], sizes = [16, 1, 1], strides = [1, 1, 1]} : vector<16x1x4xf32> to vector<16x1x1xf32>
    %26 = vector.extract_strided_slice %21 {offsets = [0, 0, 0], sizes = [16, 1, 4], strides = [1, 1, 1]} : vector<16x4x4xf32> to vector<16x1x4xf32>
    %27 = vector.broadcast %25 : vector<16x1x1xf32> to vector<16x1x4xf32>
    %28 = arith.mulf %27, %26 : vector<16x1x4xf32>
    %29 = arith.mulf %28, %24 : vector<16x1x4xf32>
    %30 = vector.extract_strided_slice %1 {offsets = [0, 0, 0], sizes = [16, 1, 2], strides = [1, 1, 1]} : vector<16x4x2xf32> to vector<16x1x2xf32>
    %31 = vector.shape_cast %30 : vector<16x1x2xf32> to vector<16x2xf32>
    %cst_9 = arith.constant 0.000000e+00 : f32
    %32 = vector.broadcast %cst_9 : f32 to vector<16x8xf32>
    %33 = vector.extract_strided_slice %3 {offsets = [0, 0, 0], sizes = [16, 1, 4], strides = [1, 1, 1]} : vector<16x2x4xf32> to vector<16x1x4xf32>
    %34 = arith.mulf %29, %33 : vector<16x1x4xf32>
    %cst_10 = arith.constant dense<0.000000e+00> : vector<16x1xf32>
    %35 = vector.multi_reduction <add>, %34, %cst_10 [2] : vector<16x1x4xf32> to vector<16x1xf32>
    %c0_11 = arith.constant 0 : index
    %c0_12 = arith.constant 0 : index
    %36 = vector.load %arg3[%c0_11, %c0_12] : memref<4x8xf32, #tpu.memory_space<vmem>>, vector<1x8xf32>
    %37 = vector.broadcast %35 : vector<16x1xf32> to vector<16x8xf32>
    %38 = vector.broadcast %36 : vector<1x8xf32> to vector<16x8xf32>
    %39 = arith.mulf %37, %38 : vector<16x8xf32>
    %40 = arith.addf %32, %39 : vector<16x8xf32>
    %41 = vector.extract_strided_slice %31 {offsets = [0, 0], sizes = [16, 1], strides = [1, 1]} : vector<16x2xf32> to vector<16x1xf32>
    %c2 = arith.constant 2 : index
    %c0_13 = arith.constant 0 : index
    %42 = vector.load %arg3[%c2, %c0_13] : memref<4x8xf32, #tpu.memory_space<vmem>>, vector<1x8xf32>
    %43 = vector.broadcast %41 : vector<16x1xf32> to vector<16x8xf32>
    %44 = vector.broadcast %42 : vector<1x8xf32> to vector<16x8xf32>
    %45 = arith.mulf %43, %44 : vector<16x8xf32>
    %46 = arith.addf %40, %45 : vector<16x8xf32>
    %47 = vector.extract_strided_slice %3 {offsets = [0, 1, 0], sizes = [16, 1, 4], strides = [1, 1, 1]} : vector<16x2x4xf32> to vector<16x1x4xf32>
    %48 = arith.mulf %29, %47 : vector<16x1x4xf32>
    %cst_14 = arith.constant dense<0.000000e+00> : vector<16x1xf32>
    %49 = vector.multi_reduction <add>, %48, %cst_14 [2] : vector<16x1x4xf32> to vector<16x1xf32>
    %c1 = arith.constant 1 : index
    %c0_15 = arith.constant 0 : index
    %50 = vector.load %arg3[%c1, %c0_15] : memref<4x8xf32, #tpu.memory_space<vmem>>, vector<1x8xf32>
    %51 = vector.broadcast %49 : vector<16x1xf32> to vector<16x8xf32>
    %52 = vector.broadcast %50 : vector<1x8xf32> to vector<16x8xf32>
    %53 = arith.mulf %51, %52 : vector<16x8xf32>
    %54 = arith.addf %46, %53 : vector<16x8xf32>
    %55 = vector.extract_strided_slice %31 {offsets = [0, 1], sizes = [16, 1], strides = [1, 1]} : vector<16x2xf32> to vector<16x1xf32>
    %c3 = arith.constant 3 : index
    %c0_16 = arith.constant 0 : index
    %56 = vector.load %arg3[%c3, %c0_16] : memref<4x8xf32, #tpu.memory_space<vmem>>, vector<1x8xf32>
    %57 = vector.broadcast %55 : vector<16x1xf32> to vector<16x8xf32>
    %58 = vector.broadcast %56 : vector<1x8xf32> to vector<16x8xf32>
    %59 = arith.mulf %57, %58 : vector<16x8xf32>
    %60 = arith.addf %54, %59 : vector<16x8xf32>
    %c0_17 = arith.constant 0 : index
    %c0_18 = arith.constant 0 : index
    %61 = vector.load %arg4[%c0_17, %c0_18] : memref<1x8xf32, #tpu.memory_space<vmem>>, vector<1x8xf32>
    %62 = vector.broadcast %61 : vector<1x8xf32> to vector<16x8xf32>
    %63 = arith.addf %60, %62 : vector<16x8xf32>
    %cst_19 = arith.constant 0.000000e+00 : f32
    %64 = vector.broadcast %cst_19 : f32 to vector<16x8xf32>
    %65 = arith.maximumf %63, %64 : vector<16x8xf32>
    %c0_20 = arith.constant 0 : index
    %c0_21 = arith.constant 0 : index
    %c0_22 = arith.constant 0 : index
    %66 = vector.load %arg5[%c0_20, %c0_21, %c0_22] : memref<1x16x2xf32, #tpu.memory_space<vmem>>, vector<1x16x2xf32>
    %67 = vector.shape_cast %66 : vector<1x16x2xf32> to vector<16x2xf32>
    %68 = vector.shape_cast %31 : vector<16x2xf32> to vector<1x16x2xf32>
    tpu.vector_store %arg5[%c0_20, %c0_21, %c0_22], %68 {strides = array<i32>} : memref<1x16x2xf32, #tpu.memory_space<vmem>>, vector<1x16x2xf32>,
    %c0_23 = arith.constant 0 : index
    %c0_24 = arith.constant 0 : index
    %c0_25 = arith.constant 0 : index
    %69 = vector.load %arg6[%c0_23, %c0_24, %c0_25] : memref<1x16x8xf32, #tpu.memory_space<vmem>>, vector<1x16x8xf32>
    %70 = vector.shape_cast %69 : vector<1x16x8xf32> to vector<16x8xf32>
    %71 = vector.shape_cast %65 : vector<16x8xf32> to vector<1x16x8xf32>
    tpu.vector_store %arg6[%c0_23, %c0_24, %c0_25], %71 {strides = array<i32>} : memref<1x16x8xf32, #tpu.memory_space<vmem>>, vector<1x16x8xf32>,
    return
  }
  func.func @transform_0(%arg0: i32) -> (i32, i32, i32, i32) {
    %c0_i32 = arith.constant 0 : i32
    %c0_i32_0 = arith.constant 0 : i32
    %c0_i32_1 = arith.constant 0 : i32
    %c0_i32_2 = arith.constant 0 : i32
    return %arg0, %c0_i32, %c0_i32_0, %c0_i32_1 : i32, i32, i32, i32
  }
  func.func @transform_1(%arg0: i32) -> (i32, i32, i32, i32) {
    %c0_i32 = arith.constant 0 : i32
    %c0_i32_0 = arith.constant 0 : i32
    %c0_i32_1 = arith.constant 0 : i32
    %c0_i32_2 = arith.constant 0 : i32
    return %arg0, %c0_i32, %c0_i32_0, %c0_i32_1 : i32, i32, i32, i32
  }
  func.func @transform_2(%arg0: i32) -> (i32, i32) {
    %c0_i32 = arith.constant 0 : i32
    %c0_i32_0 = arith.constant 0 : i32
    %c0_i32_1 = arith.constant 0 : i32
    return %c0_i32, %c0_i32_0 : i32, i32
  }
  func.func @transform_3(%arg0: i32) -> (i32, i32) {
    %c0_i32 = arith.constant 0 : i32
    %c0_i32_0 = arith.constant 0 : i32
    %c0_i32_1 = arith.constant 0 : i32
    return %c0_i32, %c0_i32_0 : i32, i32
  }
  func.func @transform_4(%arg0: i32) -> (i32, i32, i32) {
    %c0_i32 = arith.constant 0 : i32
    %c0_i32_0 = arith.constant 0 : i32
    %c0_i32_1 = arith.constant 0 : i32
    return %arg0, %c0_i32, %c0_i32_0 : i32, i32, i32
  }
  func.func @transform_5(%arg0: i32) -> (i32, i32, i32) {
    %c0_i32 = arith.constant 0 : i32
    %c0_i32_0 = arith.constant 0 : i32
    %c0_i32_1 = arith.constant 0 : i32
    return %arg0, %c0_i32, %c0_i32_0 : i32, i32, i32
  }
}

</mosaic_0001>

<llo_original>
// kernel: tpu_custom_call.1
$region0: #{tpu_custom_call.1}
  #allocation0 [shape = 'u32[]', space=smem, size = 0x4, offset = 0x4, fixed_abs, tag = 'smem constant byte address 0x4 - core index']
  #allocation1 [shape = 'u32[144,128]{1,0:T(1,128)}', space=vmem, size = 0x12000, scoped, tag = 'internal scratch']
  %s0 = inlined_call_operand.vmem [shape: f32[2,16,4,2], index: 0, kind: input, shape index: {}]
  %s1 = inlined_call_operand.vmem [shape: f32[2,16,2,4], index: 1, kind: input, shape index: {}]
  %s2 = inlined_call_operand.vmem [shape: f32[4,8], index: 2, kind: input, shape index: {}]
  %s3 = inlined_call_operand.vmem [shape: f32[1,8], index: 3, kind: input, shape index: {}]
  %s4 = inlined_call_operand.vmem [shape: f32[2,16,2], index: 4, kind: output, shape index: {0}]
  %s5 = inlined_call_operand.vmem [shape: f32[2,16,8], index: 5, kind: output, shape index: {1}]
  %6 = xla_tuple %s4, %s5
  %s7 = sld [smem:[#allocation0]]
  $region57: #{tpu_custom_call.1} parent=0
    _
  %s9 = ssub.s32 1, %s7
  %s10 = scalar_select 0, %s9, %s7
  loop: start=0, step=1, limit=4
  $region2: #{tpu_custom_call.1} parent=0 // loop_pre_header
    _
  $region3: #{tpu_custom_call.1} parent=0 // loop_header
    %s12 = sphi 0, %s16
    %p13 = scmp.ge.s32.totalorder %s12, 4
    %s22 = sphi 0, %s24
    %s25 = sphi 0, %s22
    %s26 = sphi 0, %s25
    %s42 = sphi 0, %s26
    %s48 = sphi 0, %s50
    %s51 = sphi 0, %s48
    %s52 = sphi 0, %s51
    %s68 = sphi 0, %s52
    %s72 = sphi 0, %s72
    %s74 = sphi 0, %s72
    %s75 = sphi 0, %s74
    %s89 = sphi 0, %s75
    %s93 = sphi 0, %s93
    %s95 = sphi 0, %s93
    %s96 = sphi 0, %s95
    %s110 = sphi 0, %s96
    %s116 = sphi 0, %s118
    %s119 = sphi 0, %s116
    %s120 = sphi 0, %s119
    %s136 = sphi 0, %s120
    %s142 = sphi 0, %s144
    %s145 = sphi 0, %s142
    %s146 = sphi 0, %s145
    %s162 = sphi 0, %s146
  $region4: #{tpu_custom_call.1} parent=0 // loop_header_branch
    %15 = sbr.rel (%p13) target = $region8
  $region5: #{tpu_custom_call.1} parent=0 // loop_body
    %s17 = ssub.s32 %s12, 1
    %s18 = ssub.s32 %s12, 2
    %s19 = sadd.s32 %s12, 1
    %s20 = ssub.s32 %s12, %s19
    %p21 = scmp.eq.s32.totalorder %s20, 0
    %s23 = sadd.s32 %s22, 1
    %s24 = scalar_select %p21, %s22, %s23
    %p27 = pneg %p21
    %p28 = scmp.eq.s32.totalorder %s12, 1
    %p29 = por %p27, %p28
    %p30 = scmp.ne.s32.totalorder %s22, %s25
    %p31 = scmp.eq.s32.totalorder %s12, 0
    %p32 = por %p30, %p31
    %p33 = scmp.ne.s32.totalorder %s22, %s25
    %p34 = scmp.eq.s32.totalorder %s17, 1
    %p35 = por %p33, %p34
    %p36 = scmp.ne.s32.totalorder %s25, %s26
    %p37 = scmp.eq.s32.totalorder %s17, 0
    %p38 = por %p36, %p37
    %p39 = scmp.ne.s32.totalorder %s25, %s26
    %p40 = scmp.eq.s32.totalorder %s18, 1
    %p41 = por %p39, %p40
    %p43 = scmp.ne.s32.totalorder %s26, %s42
    %p44 = scmp.eq.s32.totalorder %s18, 0
    %p45 = por %p43, %p44
    %s46 = ssub.s32 %s12, %s19
    %p47 = scmp.eq.s32.totalorder %s46, 0
    %s49 = sadd.s32 %s48, 1
    %s50 = scalar_select %p47, %s48, %s49
    %p53 = pneg %p47
    %p54 = scmp.eq.s32.totalorder %s12, 1
    %p55 = por %p53, %p54
    %p56 = scmp.ne.s32.totalorder %s48, %s51
    %p57 = scmp.eq.s32.totalorder %s12, 0
    %p58 = por %p56, %p57
    %p59 = scmp.ne.s32.totalorder %s48, %s51
    %p60 = scmp.eq.s32.totalorder %s17, 1
    %p61 = por %p59, %p60
    %p62 = scmp.ne.s32.totalorder %s51, %s52
    %p63 = scmp.eq.s32.totalorder %s17, 0
    %p64 = por %p62, %p63
    %p65 = scmp.ne.s32.totalorder %s51, %s52
    %p66 = scmp.eq.s32.totalorder %s18, 1
    %p67 = por %p65, %p66
    %p69 = scmp.ne.s32.totalorder %s52, %s68
    %p70 = scmp.eq.s32.totalorder %s18, 0
    %p71 = por %p69, %p70
    %s73 = sadd.s32 %s72, 1
    %p76 = scmp.eq.s32.totalorder %s12, 1
    %p77 = scmp.ne.s32.totalorder %s72, %s74
    %p78 = scmp.eq.s32.totalorder %s12, 0
    %p79 = por %p77, %p78
    %p80 = scmp.ne.s32.totalorder %s72, %s74
    %p81 = scmp.eq.s32.totalorder %s17, 1
    %p82 = por %p80, %p81
    %p83 = scmp.ne.s32.totalorder %s74, %s75
    %p84 = scmp.eq.s32.totalorder %s17, 0
    %p85 = por %p83, %p84
    %p86 = scmp.ne.s32.totalorder %s74, %s75
    %p87 = scmp.eq.s32.totalorder %s18, 1
    %p88 = por %p86, %p87
    %p90 = scmp.ne.s32.totalorder %s75, %s89
    %p91 = scmp.eq.s32.totalorder %s18, 0
    %p92 = por %p90, %p91
    %s94 = sadd.s32 %s93, 1
    %p97 = scmp.eq.s32.totalorder %s12, 1
    %p98 = scmp.ne.s32.totalorder %s93, %s95
    %p99 = scmp.eq.s32.totalorder %s12, 0
    %p100 = por %p98, %p99
    %p101 = scmp.ne.s32.totalorder %s93, %s95
    %p102 = scmp.eq.s32.totalorder %s17, 1
    %p103 = por %p101, %p102
    %p104 = scmp.ne.s32.totalorder %s95, %s96
    %p105 = scmp.eq.s32.totalorder %s17, 0
    %p106 = por %p104, %p105
    %p107 = scmp.ne.s32.totalorder %s95, %s96
    %p108 = scmp.eq.s32.totalorder %s18, 1
    %p109 = por %p107, %p108
    %p111 = scmp.ne.s32.totalorder %s96, %s110
    %p112 = scmp.eq.s32.totalorder %s18, 0
    %p113 = por %p111, %p112
    %s114 = ssub.s32 %s12, %s19
    %p115 = scmp.eq.s32.totalorder %s114, 0
    %s117 = sadd.s32 %s116, 1
    %s118 = scalar_select %p115, %s116, %s117
    %p121 = pneg %p115
    %p122 = scmp.eq.s32.totalorder %s12, 1
    %p123 = por %p121, %p122
    %p124 = scmp.ne.s32.totalorder %s116, %s119
    %p125 = scmp.eq.s32.totalorder %s12, 0
    %p126 = por %p124, %p125
    %p127 = scmp.ne.s32.totalorder %s116, %s119
    %p128 = scmp.eq.s32.totalorder %s17, 1
    %p129 = por %p127, %p128
    %p130 = scmp.ne.s32.totalorder %s119, %s120
    %p131 = scmp.eq.s32.totalorder %s17, 0
    %p132 = por %p130, %p131
    %p133 = scmp.ne.s32.totalorder %s119, %s120
    %p134 = scmp.eq.s32.totalorder %s18, 1
    %p135 = por %p133, %p134
    %p137 = scmp.ne.s32.totalorder %s120, %s136
    %p138 = scmp.eq.s32.totalorder %s18, 0
    %p139 = por %p137, %p138
    %s140 = ssub.s32 %s12, %s19
    %p141 = scmp.eq.s32.totalorder %s140, 0
    %s143 = sadd.s32 %s142, 1
    %s144 = scalar_select %p141, %s142, %s143
    %p147 = pneg %p141
    %p148 = scmp.eq.s32.totalorder %s12, 1
    %p149 = por %p147, %p148
    %p150 = scmp.ne.s32.totalorder %s142, %s145
    %p151 = scmp.eq.s32.totalorder %s12, 0
    %p152 = por %p150, %p151
    %p153 = scmp.ne.s32.totalorder %s142, %s145
    %p154 = scmp.eq.s32.totalorder %s17, 1
    %p155 = por %p153, %p154
    %p156 = scmp.ne.s32.totalorder %s145, %s146
    %p157 = scmp.eq.s32.totalorder %s17, 0
    %p158 = por %p156, %p157
    %p159 = scmp.ne.s32.totalorder %s145, %s146
    %p160 = scmp.eq.s32.totalorder %s18, 1
    %p161 = por %p159, %p160
    %p163 = scmp.ne.s32.totalorder %s146, %s162
    %p164 = scmp.eq.s32.totalorder %s18, 0
    %p165 = por %p163, %p164
    %p166 = scmp.le.s32.totalorder 1, %s12
    %p167 = scmp.lt.s32.totalorder %s12, 3
    %p168 = pnand %p166, %p167
    %p169 = pneg %p168
    // Predicated region
    $region9: #{tpu_custom_call.1} parent=5 // pred_check
      _
    $region10: #{tpu_custom_call.1} parent=5 // pred_check_branch
      %171 = sbr.rel (%p168) target = $region12
    $region11: #{tpu_custom_call.1} parent=5 // pred_region
      %s172 = ssub.s32 %s12, 1
      // Predicated region
      $region13: #{tpu_custom_call.1} parent=11 // pred_check
        %p173 = pneg %p85
      $region14: #{tpu_custom_call.1} parent=11 // pred_check_branch
        %175 = sbr.rel (%p173) target = $region16
      $region15: #{tpu_custom_call.1} parent=11 // pred_region
        _
      $region16: #{tpu_custom_call.1} parent=11 // pred_fallthru
        _
      // Predicated region
      $region17: #{tpu_custom_call.1} parent=11 // pred_check
        %p176 = pneg %p106
      $region18: #{tpu_custom_call.1} parent=11 // pred_check_branch
        %178 = sbr.rel (%p176) target = $region20
      $region19: #{tpu_custom_call.1} parent=11 // pred_region
        _
      $region20: #{tpu_custom_call.1} parent=11 // pred_fallthru
        _
    $region12: #{tpu_custom_call.1} parent=5 // pred_fallthru
      _
    %p179 = scmp.lt.s32.totalorder %s12, 2
    // Predicated region
    $region21: #{tpu_custom_call.1} parent=5 // pred_check
      %p180 = pneg %p179
    $region22: #{tpu_custom_call.1} parent=5 // pred_check_branch
      %182 = sbr.rel (%p180) target = $region24
    $region23: #{tpu_custom_call.1} parent=5 // pred_region
      // Predicated region
      $region25: #{tpu_custom_call.1} parent=23 // pred_check
        %p183 = pneg %p32
      $region26: #{tpu_custom_call.1} parent=23 // pred_check_branch
        %185 = sbr.rel (%p183) target = $region28
      $region27: #{tpu_custom_call.1} parent=23 // pred_region
        %p186 = scmp.lt.s32.totalorder %s12, 1
        %s187 = scalar_select %p186, %s12, 1
        %s188 = smul.addr %s187, 16
        %s189 = smul.addr %s188, 4
        %s190 = scalar_lea.vmem %s0, %s189
      $region28: #{tpu_custom_call.1} parent=23 // pred_fallthru
        _
      // Predicated region
      $region29: #{tpu_custom_call.1} parent=23 // pred_check
        %p191 = pneg %p58
      $region30: #{tpu_custom_call.1} parent=23 // pred_check_branch
        %193 = sbr.rel (%p191) target = $region32
      $region31: #{tpu_custom_call.1} parent=23 // pred_region
        %p194 = scmp.lt.s32.totalorder %s12, 1
        %s195 = scalar_select %p194, %s12, 1
        %s196 = smul.addr %s195, 16
        %s197 = smul.addr %s196, 2
        %s198 = scalar_lea.vmem %s1, %s197
      $region32: #{tpu_custom_call.1} parent=23 // pred_fallthru
        _
    $region24: #{tpu_custom_call.1} parent=5 // pred_fallthru
      _
    %p199 = scmp.le.s32.totalorder 1, %s12
    %p200 = scmp.lt.s32.totalorder %s12, 3
    %p201 = pnand %p199, %p200
    %p202 = pneg %p201
    // Predicated region
    $region33: #{tpu_custom_call.1} parent=5 // pred_check
      _
    $region34: #{tpu_custom_call.1} parent=5 // pred_check_branch
      %204 = sbr.rel (%p201) target = $region36
    $region35: #{tpu_custom_call.1} parent=5 // pred_region
      %s205 = ssub.s32 %s12, 1
      %p206 = scmp.lt.s32.totalorder %s17, 1
      %s207 = scalar_select %p206, %s17, 1
      %s208 = smul.addr %s207, 16
      %s209 = smul.addr %s208, 4
      %s210 = scalar_lea.vmem %s0, %s209
      %p211 = pneg %p38
      %p212 = pneg %p35
      %p213 = scmp.lt.s32.totalorder %s17, 1
      %s214 = scalar_select %p213, %s17, 1
      %s215 = smul.addr %s214, 16
      %s216 = smul.addr %s215, 2
      %s217 = scalar_lea.vmem %s1, %s216
      %p218 = pneg %p64
      %p219 = pneg %p61
      %p220 = pneg %p85
      %p221 = pneg %p82
      %p222 = pneg %p106
      %p223 = pneg %p103
      %p224 = pneg %p132
      %p225 = pneg %p129
      %p226 = scmp.lt.s32.totalorder %s17, 1
      %s227 = scalar_select %p226, %s17, 1
      %s228 = smul.addr %s227, 2
      %s229 = smul.addr %s228, 8
      %s230 = scalar_lea.vmem %s4, %s229
      %p231 = pneg %p158
      %p232 = pneg %p155
      %p233 = scmp.lt.s32.totalorder %s17, 1
      %s234 = scalar_select %p233, %s17, 1
      %s235 = smul.addr %s234, 2
      %s236 = smul.addr %s235, 8
      %s237 = scalar_lea.vmem %s5, %s236
      %p238 = scmp.lt.s32.totalorder %s17, 1
      %s239 = scalar_select %p238, %s17, 1
      %s240 = smul.addr %s239, 16
      %s241 = smul.addr %s240, 4
      %s242 = scalar_lea.vmem %s0, %s241
      %p243 = scmp.lt.s32.totalorder %s17, 1
      %s244 = scalar_select %p243, %s17, 1
      %s245 = smul.addr %s244, 16
      %s246 = smul.addr %s245, 2
      %s247 = scalar_lea.vmem %s1, %s246
      %p248 = scmp.lt.s32.totalorder %s17, 1
      %s249 = scalar_select %p248, %s17, 1
      %s250 = smul.addr %s249, 2
      %s251 = smul.addr %s250, 8
      %s252 = scalar_lea.vmem %s4, %s251
      %p253 = scmp.lt.s32.totalorder %s17, 1
      %s254 = scalar_select %p253, %s17, 1
      %s255 = smul.addr %s254, 2
      %s256 = smul.addr %s255, 8
      %s257 = scalar_lea.vmem %s5, %s256
      %v258 = vld [vmem:[%s242] sm:$0xf]
      %v259 = vld [vmem:[%s242 + $0x4] sm:$0xf]
      %v260 = vld [vmem:[%s242 + $0x8] sm:$0xf]
      %v261 = vld [vmem:[%s242 + $0xc] sm:$0xf]
      %v262 = vld [vmem:[%s242 + $0x10] sm:$0xf]
      %v263 = vld [vmem:[%s242 + $0x14] sm:$0xf]
      %v264 = vld [vmem:[%s242 + $0x18] sm:$0xf]
      %v265 = vld [vmem:[%s242 + $0x1c] sm:$0xf]
      %v266 = vld [vmem:[%s242 + $0x20] sm:$0xf]
      %v267 = vld [vmem:[%s242 + $0x24] sm:$0xf]
      %v268 = vld [vmem:[%s242 + $0x28] sm:$0xf]
      %v269 = vld [vmem:[%s242 + $0x2c] sm:$0xf]
      %v270 = vld [vmem:[%s242 + $0x30] sm:$0xf]
      %v271 = vld [vmem:[%s242 + $0x34] sm:$0xf]
      %v272 = vld [vmem:[%s242 + $0x38] sm:$0xf]
      %v273 = vld [vmem:[%s242 + $0x3c] sm:$0xf]
      %v274 = vld [vmem:[%s247] sm:$0x3]
      %v275 = vld [vmem:[%s247 + $0x2] sm:$0x3]
      %v276 = vld [vmem:[%s247 + $0x4] sm:$0x3]
      %v277 = vld [vmem:[%s247 + $0x6] sm:$0x3]
      %v278 = vld [vmem:[%s247 + $0x8] sm:$0x3]
      %v279 = vld [vmem:[%s247 + $0xa] sm:$0x3]
      %v280 = vld [vmem:[%s247 + $0xc] sm:$0x3]
      %v281 = vld [vmem:[%s247 + $0xe] sm:$0x3]
      %v282 = vld [vmem:[%s247 + $0x10] sm:$0x3]
      %v283 = vld [vmem:[%s247 + $0x12] sm:$0x3]
      %v284 = vld [vmem:[%s247 + $0x14] sm:$0x3]
      %v285 = vld [vmem:[%s247 + $0x16] sm:$0x3]
      %v286 = vld [vmem:[%s247 + $0x18] sm:$0x3]
      %v287 = vld [vmem:[%s247 + $0x1a] sm:$0x3]
      %v288 = vld [vmem:[%s247 + $0x1c] sm:$0x3]
      %v289 = vld [vmem:[%s247 + $0x1e] sm:$0x3]
      %291 = vset.pattern.permute.xlu0 0
      %292 = vperm.xlu0 %291, %v258
      %v293 = vpop.permute.xlu0 %292
      %296 = vset.pattern.permute.xlu0 0
      %297 = vperm.xlu0 %296, %v259
      %v298 = vpop.permute.xlu0 %297
      %301 = vset.pattern.permute.xlu0 0
      %302 = vperm.xlu0 %301, %v260
      %v303 = vpop.permute.xlu0 %302
      %306 = vset.pattern.permute.xlu0 0
      %307 = vperm.xlu0 %306, %v261
      %v308 = vpop.permute.xlu0 %307
      %311 = vset.pattern.permute.xlu0 0
      %312 = vperm.xlu0 %311, %v262
      %v313 = vpop.permute.xlu0 %312
      %316 = vset.pattern.permute.xlu0 0
      %317 = vperm.xlu0 %316, %v263
      %v318 = vpop.permute.xlu0 %317
      %321 = vset.pattern.permute.xlu0 0
      %322 = vperm.xlu0 %321, %v264
      %v323 = vpop.permute.xlu0 %322
      %326 = vset.pattern.permute.xlu0 0
      %327 = vperm.xlu0 %326, %v265
      %v328 = vpop.permute.xlu0 %327
      %331 = vset.pattern.permute.xlu0 0
      %332 = vperm.xlu0 %331, %v266
      %v333 = vpop.permute.xlu0 %332
      %336 = vset.pattern.permute.xlu0 0
      %337 = vperm.xlu0 %336, %v267
      %v338 = vpop.permute.xlu0 %337
      %341 = vset.pattern.permute.xlu0 0
      %342 = vperm.xlu0 %341, %v268
      %v343 = vpop.permute.xlu0 %342
      %346 = vset.pattern.permute.xlu0 0
      %347 = vperm.xlu0 %346, %v269
      %v348 = vpop.permute.xlu0 %347
      %351 = vset.pattern.permute.xlu0 0
      %352 = vperm.xlu0 %351, %v270
      %v353 = vpop.permute.xlu0 %352
      %356 = vset.pattern.permute.xlu0 0
      %357 = vperm.xlu0 %356, %v271
      %v358 = vpop.permute.xlu0 %357
      %361 = vset.pattern.permute.xlu0 0
      %362 = vperm.xlu0 %361, %v272
      %v363 = vpop.permute.xlu0 %362
      %366 = vset.pattern.permute.xlu0 0
      %367 = vperm.xlu0 %366, %v273
      %v368 = vpop.permute.xlu0 %367
      %v370 = vlaneseq
      %v371 = vshrl.u32 %v370, 7
      %v372 = vsub.s32 0, %v371
      %v373 = vrot.slane %v274, %v372
      %v374 = vlaneseq
      %v375 = vshrl.u32 %v374, 7
      %v376 = vsub.s32 0, %v375
      %v377 = vrot.slane %v275, %v376
      %v378 = vlaneseq
      %v379 = vshrl.u32 %v378, 7
      %v380 = vsub.s32 0, %v379
      %v381 = vrot.slane %v276, %v380
      %v382 = vlaneseq
      %v383 = vshrl.u32 %v382, 7
      %v384 = vsub.s32 0, %v383
      %v385 = vrot.slane %v277, %v384
      %v386 = vlaneseq
      %v387 = vshrl.u32 %v386, 7
      %v388 = vsub.s32 0, %v387
      %v389 = vrot.slane %v278, %v388
      %v390 = vlaneseq
      %v391 = vshrl.u32 %v390, 7
      %v392 = vsub.s32 0, %v391
      %v393 = vrot.slane %v279, %v392
      %v394 = vlaneseq
      %v395 = vshrl.u32 %v394, 7
      %v396 = vsub.s32 0, %v395
      %v397 = vrot.slane %v280, %v396
      %v398 = vlaneseq
      %v399 = vshrl.u32 %v398, 7
      %v400 = vsub.s32 0, %v399
      %v401 = vrot.slane %v281, %v400
      %v402 = vlaneseq
      %v403 = vshrl.u32 %v402, 7
      %v404 = vsub.s32 0, %v403
      %v405 = vrot.slane %v282, %v404
      %v406 = vlaneseq
      %v407 = vshrl.u32 %v406, 7
      %v408 = vsub.s32 0, %v407
      %v409 = vrot.slane %v283, %v408
      %v410 = vlaneseq
      %v411 = vshrl.u32 %v410, 7
      %v412 = vsub.s32 0, %v411
      %v413 = vrot.slane %v284, %v412
      %v414 = vlaneseq
      %v415 = vshrl.u32 %v414, 7
      %v416 = vsub.s32 0, %v415
      %v417 = vrot.slane %v285, %v416
      %v418 = vlaneseq
      %v419 = vshrl.u32 %v418, 7
      %v420 = vsub.s32 0, %v419
      %v421 = vrot.slane %v286, %v420
      %v422 = vlaneseq
      %v423 = vshrl.u32 %v422, 7
      %v424 = vsub.s32 0, %v423
      %v425 = vrot.slane %v287, %v424
      %v426 = vlaneseq
      %v427 = vshrl.u32 %v426, 7
      %v428 = vsub.s32 0, %v427
      %v429 = vrot.slane %v288, %v428
      %v430 = vlaneseq
      %v431 = vshrl.u32 %v430, 7
      %v432 = vsub.s32 0, %v431
      %v433 = vrot.slane %v289, %v432
      %v434 = vsub.f32 %v293, %v373
      %v435 = vsub.f32 %v298, %v377
      %v436 = vsub.f32 %v303, %v381
      %v437 = vsub.f32 %v308, %v385
      %v438 = vsub.f32 %v313, %v389
      %v439 = vsub.f32 %v318, %v393
      %v440 = vsub.f32 %v323, %v397
      %v441 = vsub.f32 %v328, %v401
      %v442 = vsub.f32 %v333, %v405
      %v443 = vsub.f32 %v338, %v409
      %v444 = vsub.f32 %v343, %v413
      %v445 = vsub.f32 %v348, %v417
      %v446 = vsub.f32 %v353, %v421
      %v447 = vsub.f32 %v358, %v425
      %v448 = vsub.f32 %v363, %v429
      %v449 = vsub.f32 %v368, %v433
      %v450 = vmul.f32 %v434, %v434
      %v451 = vmul.f32 %v435, %v435
      %v452 = vmul.f32 %v436, %v436
      %v453 = vmul.f32 %v437, %v437
      %v454 = vmul.f32 %v438, %v438
      %v455 = vmul.f32 %v439, %v439
      %v456 = vmul.f32 %v440, %v440
      %v457 = vmul.f32 %v441, %v441
      %v458 = vmul.f32 %v442, %v442
      %v459 = vmul.f32 %v443, %v443
      %v460 = vmul.f32 %v444, %v444
      %v461 = vmul.f32 %v445, %v445
      %v462 = vmul.f32 %v446, %v446
      %v463 = vmul.f32 %v447, %v447
      %v464 = vmul.f32 %v448, %v448
      %v465 = vmul.f32 %v449, %v449
      %v466 = vadd.f32 %v450, 0.0
      %v467 = vadd.f32 %v451, 0.0
      %v468 = vadd.f32 %v452, 0.0
      %v469 = vadd.f32 %v453, 0.0
      %v470 = vadd.f32 %v454, 0.0
      %v471 = vadd.f32 %v455, 0.0
      %v472 = vadd.f32 %v456, 0.0
      %v473 = vadd.f32 %v457, 0.0
      %v474 = vadd.f32 %v458, 0.0
      %v475 = vadd.f32 %v459, 0.0
      %v476 = vadd.f32 %v460, 0.0
      %v477 = vadd.f32 %v461, 0.0
      %v478 = vadd.f32 %v462, 0.0
      %v479 = vadd.f32 %v463, 0.0
      %v480 = vadd.f32 %v464, 0.0
      %v481 = vadd.f32 %v465, 0.0
      %482 = vset.pattern.permute.xlu0 1
      %483 = vperm.xlu0 %482, %v258
      %v484 = vpop.permute.xlu0 %483
      %486 = vset.pattern.permute.xlu0 1
      %487 = vperm.xlu0 %486, %v259
      %v488 = vpop.permute.xlu0 %487
      %490 = vset.pattern.permute.xlu0 1
      %491 = vperm.xlu0 %490, %v260
      %v492 = vpop.permute.xlu0 %491
      %494 = vset.pattern.permute.xlu0 1
      %495 = vperm.xlu0 %494, %v261
      %v496 = vpop.permute.xlu0 %495
      %498 = vset.pattern.permute.xlu0 1
      %499 = vperm.xlu0 %498, %v262
      %v500 = vpop.permute.xlu0 %499
      %502 = vset.pattern.permute.xlu0 1
      %503 = vperm.xlu0 %502, %v263
      %v504 = vpop.permute.xlu0 %503
      %506 = vset.pattern.permute.xlu0 1
      %507 = vperm.xlu0 %506, %v264
      %v508 = vpop.permute.xlu0 %507
      %510 = vset.pattern.permute.xlu0 1
      %511 = vperm.xlu0 %510, %v265
      %v512 = vpop.permute.xlu0 %511
      %514 = vset.pattern.permute.xlu0 1
      %515 = vperm.xlu0 %514, %v266
      %v516 = vpop.permute.xlu0 %515
      %518 = vset.pattern.permute.xlu0 1
      %519 = vperm.xlu0 %518, %v267
      %v520 = vpop.permute.xlu0 %519
      %522 = vset.pattern.permute.xlu0 1
      %523 = vperm.xlu0 %522, %v268
      %v524 = vpop.permute.xlu0 %523
      %526 = vset.pattern.permute.xlu0 1
      %527 = vperm.xlu0 %526, %v269
      %v528 = vpop.permute.xlu0 %527
      %530 = vset.pattern.permute.xlu0 1
      %531 = vperm.xlu0 %530, %v270
      %v532 = vpop.permute.xlu0 %531
      %534 = vset.pattern.permute.xlu0 1
      %535 = vperm.xlu0 %534, %v271
      %v536 = vpop.permute.xlu0 %535
      %538 = vset.pattern.permute.xlu0 1
      %539 = vperm.xlu0 %538, %v272
      %v540 = vpop.permute.xlu0 %539
      %542 = vset.pattern.permute.xlu0 1
      %543 = vperm.xlu0 %542, %v273
      %v544 = vpop.permute.xlu0 %543
      %v546 = vlaneseq
      %v547 = vshrl.u32 %v546, 7
      %v548 = vsub.s32 1, %v547
      %v549 = vrot.slane %v274, %v548
      %v550 = vlaneseq
      %v551 = vshrl.u32 %v550, 7
      %v552 = vsub.s32 1, %v551
      %v553 = vrot.slane %v275, %v552
      %v554 = vlaneseq
      %v555 = vshrl.u32 %v554, 7
      %v556 = vsub.s32 1, %v555
      %v557 = vrot.slane %v276, %v556
      %v558 = vlaneseq
      %v559 = vshrl.u32 %v558, 7
      %v560 = vsub.s32 1, %v559
      %v561 = vrot.slane %v277, %v560
      %v562 = vlaneseq
      %v563 = vshrl.u32 %v562, 7
      %v564 = vsub.s32 1, %v563
      %v565 = vrot.slane %v278, %v564
      %v566 = vlaneseq
      %v567 = vshrl.u32 %v566, 7
      %v568 = vsub.s32 1, %v567
      %v569 = vrot.slane %v279, %v568
      %v570 = vlaneseq
      %v571 = vshrl.u32 %v570, 7
      %v572 = vsub.s32 1, %v571
      %v573 = vrot.slane %v280, %v572
      %v574 = vlaneseq
      %v575 = vshrl.u32 %v574, 7
      %v576 = vsub.s32 1, %v575
      %v577 = vrot.slane %v281, %v576
      %v578 = vlaneseq
      %v579 = vshrl.u32 %v578, 7
      %v580 = vsub.s32 1, %v579
      %v581 = vrot.slane %v282, %v580
      %v582 = vlaneseq
      %v583 = vshrl.u32 %v582, 7
      %v584 = vsub.s32 1, %v583
      %v585 = vrot.slane %v283, %v584
      %v586 = vlaneseq
      %v587 = vshrl.u32 %v586, 7
      %v588 = vsub.s32 1, %v587
      %v589 = vrot.slane %v284, %v588
      %v590 = vlaneseq
      %v591 = vshrl.u32 %v590, 7
      %v592 = vsub.s32 1, %v591
      %v593 = vrot.slane %v285, %v592
      %v594 = vlaneseq
      %v595 = vshrl.u32 %v594, 7
      %v596 = vsub.s32 1, %v595
      %v597 = vrot.slane %v286, %v596
      %v598 = vlaneseq
      %v599 = vshrl.u32 %v598, 7
      %v600 = vsub.s32 1, %v599
      %v601 = vrot.slane %v287, %v600
      %v602 = vlaneseq
      %v603 = vshrl.u32 %v602, 7
      %v604 = vsub.s32 1, %v603
      %v605 = vrot.slane %v288, %v604
      %v606 = vlaneseq
      %v607 = vshrl.u32 %v606, 7
      %v608 = vsub.s32 1, %v607
      %v609 = vrot.slane %v289, %v608
      %v610 = vsub.f32 %v484, %v549
      %v611 = vsub.f32 %v488, %v553
      %v612 = vsub.f32 %v492, %v557
      %v613 = vsub.f32 %v496, %v561
      %v614 = vsub.f32 %v500, %v565
      %v615 = vsub.f32 %v504, %v569
      %v616 = vsub.f32 %v508, %v573
      %v617 = vsub.f32 %v512, %v577
      %v618 = vsub.f32 %v516, %v581
      %v619 = vsub.f32 %v520, %v585
      %v620 = vsub.f32 %v524, %v589
      %v621 = vsub.f32 %v528, %v593
      %v622 = vsub.f32 %v532, %v597
      %v623 = vsub.f32 %v536, %v601
      %v624 = vsub.f32 %v540, %v605
      %v625 = vsub.f32 %v544, %v609
      %v626 = vmul.f32 %v610, %v610
      %v627 = vmul.f32 %v611, %v611
      %v628 = vmul.f32 %v612, %v612
      %v629 = vmul.f32 %v613, %v613
      %v630 = vmul.f32 %v614, %v614
      %v631 = vmul.f32 %v615, %v615
      %v632 = vmul.f32 %v616, %v616
      %v633 = vmul.f32 %v617, %v617
      %v634 = vmul.f32 %v618, %v618
      %v635 = vmul.f32 %v619, %v619
      %v636 = vmul.f32 %v620, %v620
      %v637 = vmul.f32 %v621, %v621
      %v638 = vmul.f32 %v622, %v622
      %v639 = vmul.f32 %v623, %v623
      %v640 = vmul.f32 %v624, %v624
      %v641 = vmul.f32 %v625, %v625
      %v642 = vadd.f32 %v466, %v626
      %v643 = vadd.f32 %v467, %v627
      %v644 = vadd.f32 %v468, %v628
      %v645 = vadd.f32 %v469, %v629
      %v646 = vadd.f32 %v470, %v630
      %v647 = vadd.f32 %v471, %v631
      %v648 = vadd.f32 %v472, %v632
      %v649 = vadd.f32 %v473, %v633
      %v650 = vadd.f32 %v474, %v634
      %v651 = vadd.f32 %v475, %v635
      %v652 = vadd.f32 %v476, %v636
      %v653 = vadd.f32 %v477, %v637
      %v654 = vadd.f32 %v478, %v638
      %v655 = vadd.f32 %v479, %v639
      %v656 = vadd.f32 %v480, %v640
      %v657 = vadd.f32 %v481, %v641
      %v658 = vrsqrt.pop %v642
      %v659 = vrsqrt.pop %v643
      %v660 = vrsqrt.pop %v644
      %v661 = vrsqrt.pop %v645
      %v662 = vrsqrt.pop %v646
      %v663 = vrsqrt.pop %v647
      %v664 = vrsqrt.pop %v648
      %v665 = vrsqrt.pop %v649
      %v666 = vrsqrt.pop %v650
      %v667 = vrsqrt.pop %v651
      %v668 = vrsqrt.pop %v652
      %v669 = vrsqrt.pop %v653
      %v670 = vrsqrt.pop %v654
      %v671 = vrsqrt.pop %v655
      %v672 = vrsqrt.pop %v656
      %v673 = vrsqrt.pop %v657
      %v674 = vmin.f32 %v658, 1.0
      %v675 = vmin.f32 %v659, 1.0
      %v676 = vmin.f32 %v660, 1.0
      %v677 = vmin.f32 %v661, 1.0
      %v678 = vmin.f32 %v662, 1.0
      %v679 = vmin.f32 %v663, 1.0
      %v680 = vmin.f32 %v664, 1.0
      %v681 = vmin.f32 %v665, 1.0
      %v682 = vmin.f32 %v666, 1.0
      %v683 = vmin.f32 %v667, 1.0
      %v684 = vmin.f32 %v668, 1.0
      %v685 = vmin.f32 %v669, 1.0
      %v686 = vmin.f32 %v670, 1.0
      %v687 = vmin.f32 %v671, 1.0
      %v688 = vmin.f32 %v672, 1.0
      %v689 = vmin.f32 %v673, 1.0
      %vm690 = vcmask 27648
      %v691 = vsel %vm690, %v674, 0.0
      %v692 = vrot.slane %v691, 4
      %v693 = vadd.f32 %v691, %v692
      %v694 = vrot.slane %v693, 2
      %v695 = vadd.f32 %v693, %v694
      %v696 = vrot.slane %v695, 1
      %v697 = vadd.f32 %v695, %v696
      %v698 = vsel %vm690, %v675, 0.0
      %v699 = vrot.slane %v698, 4
      %v700 = vadd.f32 %v698, %v699
      %v701 = vrot.slane %v700, 2
      %v702 = vadd.f32 %v700, %v701
      %v703 = vrot.slane %v702, 1
      %v704 = vadd.f32 %v702, %v703
      %v705 = vsel %vm690, %v676, 0.0
      %v706 = vrot.slane %v705, 4
      %v707 = vadd.f32 %v705, %v706
      %v708 = vrot.slane %v707, 2
      %v709 = vadd.f32 %v707, %v708
      %v710 = vrot.slane %v709, 1
      %v711 = vadd.f32 %v709, %v710
      %v712 = vsel %vm690, %v677, 0.0
      %v713 = vrot.slane %v712, 4
      %v714 = vadd.f32 %v712, %v713
      %v715 = vrot.slane %v714, 2
      %v716 = vadd.f32 %v714, %v715
      %v717 = vrot.slane %v716, 1
      %v718 = vadd.f32 %v716, %v717
      %v719 = vsel %vm690, %v678, 0.0
      %v720 = vrot.slane %v719, 4
      %v721 = vadd.f32 %v719, %v720
      %v722 = vrot.slane %v721, 2
      %v723 = vadd.f32 %v721, %v722
      %v724 = vrot.slane %v723, 1
      %v725 = vadd.f32 %v723, %v724
      %v726 = vsel %vm690, %v679, 0.0
      %v727 = vrot.slane %v726, 4
      %v728 = vadd.f32 %v726, %v727
      %v729 = vrot.slane %v728, 2
      %v730 = vadd.f32 %v728, %v729
      %v731 = vrot.slane %v730, 1
      %v732 = vadd.f32 %v730, %v731
      %v733 = vsel %vm690, %v680, 0.0
      %v734 = vrot.slane %v733, 4
      %v735 = vadd.f32 %v733, %v734
      %v736 = vrot.slane %v735, 2
      %v737 = vadd.f32 %v735, %v736
      %v738 = vrot.slane %v737, 1
      %v739 = vadd.f32 %v737, %v738
      %v740 = vsel %vm690, %v681, 0.0
      %v741 = vrot.slane %v740, 4
      %v742 = vadd.f32 %v740, %v741
      %v743 = vrot.slane %v742, 2
      %v744 = vadd.f32 %v742, %v743
      %v745 = vrot.slane %v744, 1
      %v746 = vadd.f32 %v744, %v745
      %v747 = vsel %vm690, %v682, 0.0
      %v748 = vrot.slane %v747, 4
      %v749 = vadd.f32 %v747, %v748
      %v750 = vrot.slane %v749, 2
      %v751 = vadd.f32 %v749, %v750
      %v752 = vrot.slane %v751, 1
      %v753 = vadd.f32 %v751, %v752
      %v754 = vsel %vm690, %v683, 0.0
      %v755 = vrot.slane %v754, 4
      %v756 = vadd.f32 %v754, %v755
      %v757 = vrot.slane %v756, 2
      %v758 = vadd.f32 %v756, %v757
      %v759 = vrot.slane %v758, 1
      %v760 = vadd.f32 %v758, %v759
      %v761 = vsel %vm690, %v684, 0.0
      %v762 = vrot.slane %v761, 4
      %v763 = vadd.f32 %v761, %v762
      %v764 = vrot.slane %v763, 2
      %v765 = vadd.f32 %v763, %v764
      %v766 = vrot.slane %v765, 1
      %v767 = vadd.f32 %v765, %v766
      %v768 = vsel %vm690, %v685, 0.0
      %v769 = vrot.slane %v768, 4
      %v770 = vadd.f32 %v768, %v769
      %v771 = vrot.slane %v770, 2
      %v772 = vadd.f32 %v770, %v771
      %v773 = vrot.slane %v772, 1
      %v774 = vadd.f32 %v772, %v773
      %v775 = vsel %vm690, %v686, 0.0
      %v776 = vrot.slane %v775, 4
      %v777 = vadd.f32 %v775, %v776
      %v778 = vrot.slane %v777, 2
      %v779 = vadd.f32 %v777, %v778
      %v780 = vrot.slane %v779, 1
      %v781 = vadd.f32 %v779, %v780
      %v782 = vsel %vm690, %v687, 0.0
      %v783 = vrot.slane %v782, 4
      %v784 = vadd.f32 %v782, %v783
      %v785 = vrot.slane %v784, 2
      %v786 = vadd.f32 %v784, %v785
      %v787 = vrot.slane %v786, 1
      %v788 = vadd.f32 %v786, %v787
      %v789 = vsel %vm690, %v688, 0.0
      %v790 = vrot.slane %v789, 4
      %v791 = vadd.f32 %v789, %v790
      %v792 = vrot.slane %v791, 2
      %v793 = vadd.f32 %v791, %v792
      %v794 = vrot.slane %v793, 1
      %v795 = vadd.f32 %v793, %v794
      %v796 = vsel %vm690, %v689, 0.0
      %v797 = vrot.slane %v796, 4
      %v798 = vadd.f32 %v796, %v797
      %v799 = vrot.slane %v798, 2
      %v800 = vadd.f32 %v798, %v799
      %v801 = vrot.slane %v800, 1
      %v802 = vadd.f32 %v800, %v801
      %v803 = vrsqrt.pop %v697
      %v804 = vrsqrt.pop %v704
      %v805 = vrsqrt.pop %v711
      %v806 = vrsqrt.pop %v718
      %v807 = vrsqrt.pop %v725
      %v808 = vrsqrt.pop %v732
      %v809 = vrsqrt.pop %v739
      %v810 = vrsqrt.pop %v746
      %v811 = vrsqrt.pop %v753
      %v812 = vrsqrt.pop %v760
      %v813 = vrsqrt.pop %v767
      %v814 = vrsqrt.pop %v774
      %v815 = vrsqrt.pop %v781
      %v816 = vrsqrt.pop %v788
      %v817 = vrsqrt.pop %v795
      %v818 = vrsqrt.pop %v802
      %820 = vset.pattern.permute.xlu0 0
      %821 = vperm.xlu0 %820, %v803
      %v822 = vpop.permute.xlu0 %821
      %825 = vset.pattern.permute.xlu0 0
      %826 = vperm.xlu0 %825, %v804
      %v827 = vpop.permute.xlu0 %826
      %830 = vset.pattern.permute.xlu0 0
      %831 = vperm.xlu0 %830, %v805
      %v832 = vpop.permute.xlu0 %831
      %835 = vset.pattern.permute.xlu0 0
      %836 = vperm.xlu0 %835, %v806
      %v837 = vpop.permute.xlu0 %836
      %840 = vset.pattern.permute.xlu0 0
      %841 = vperm.xlu0 %840, %v807
      %v842 = vpop.permute.xlu0 %841
      %845 = vset.pattern.permute.xlu0 0
      %846 = vperm.xlu0 %845, %v808
      %v847 = vpop.permute.xlu0 %846
      %850 = vset.pattern.permute.xlu0 0
      %851 = vperm.xlu0 %850, %v809
      %v852 = vpop.permute.xlu0 %851
      %855 = vset.pattern.permute.xlu0 0
      %856 = vperm.xlu0 %855, %v810
      %v857 = vpop.permute.xlu0 %856
      %860 = vset.pattern.permute.xlu0 0
      %861 = vperm.xlu0 %860, %v811
      %v862 = vpop.permute.xlu0 %861
      %865 = vset.pattern.permute.xlu0 0
      %866 = vperm.xlu0 %865, %v812
      %v867 = vpop.permute.xlu0 %866
      %870 = vset.pattern.permute.xlu0 0
      %871 = vperm.xlu0 %870, %v813
      %v872 = vpop.permute.xlu0 %871
      %875 = vset.pattern.permute.xlu0 0
      %876 = vperm.xlu0 %875, %v814
      %v877 = vpop.permute.xlu0 %876
      %880 = vset.pattern.permute.xlu0 0
      %881 = vperm.xlu0 %880, %v815
      %v882 = vpop.permute.xlu0 %881
      %885 = vset.pattern.permute.xlu0 0
      %886 = vperm.xlu0 %885, %v816
      %v887 = vpop.permute.xlu0 %886
      %890 = vset.pattern.permute.xlu0 0
      %891 = vperm.xlu0 %890, %v817
      %v892 = vpop.permute.xlu0 %891
      %895 = vset.pattern.permute.xlu0 0
      %896 = vperm.xlu0 %895, %v818
      %v897 = vpop.permute.xlu0 %896
      %v899 = vmul.f32 %v822, %v674
      %v900 = vmul.f32 %v827, %v675
      %v901 = vmul.f32 %v832, %v676
      %v902 = vmul.f32 %v837, %v677
      %v903 = vmul.f32 %v842, %v678
      %v904 = vmul.f32 %v847, %v679
      %v905 = vmul.f32 %v852, %v680
      %v906 = vmul.f32 %v857, %v681
      %v907 = vmul.f32 %v862, %v682
      %v908 = vmul.f32 %v867, %v683
      %v909 = vmul.f32 %v872, %v684
      %v910 = vmul.f32 %v877, %v685
      %v911 = vmul.f32 %v882, %v686
      %v912 = vmul.f32 %v887, %v687
      %v913 = vmul.f32 %v892, %v688
      %v914 = vmul.f32 %v897, %v689
      %v915 = vmul.f32 %v899, %v803
      %v916 = vmul.f32 %v900, %v804
      %v917 = vmul.f32 %v901, %v805
      %v918 = vmul.f32 %v902, %v806
      %v919 = vmul.f32 %v903, %v807
      %v920 = vmul.f32 %v904, %v808
      %v921 = vmul.f32 %v905, %v809
      %v922 = vmul.f32 %v906, %v810
      %v923 = vmul.f32 %v907, %v811
      %v924 = vmul.f32 %v908, %v812
      %v925 = vmul.f32 %v909, %v813
      %v926 = vmul.f32 %v910, %v814
      %v927 = vmul.f32 %v911, %v815
      %v928 = vmul.f32 %v912, %v816
      %v929 = vmul.f32 %v913, %v817
      %v930 = vmul.f32 %v914, %v818
      %v931 = vmul.f32 %v915, %v274
      %v932 = vmul.f32 %v916, %v275
      %v933 = vmul.f32 %v917, %v276
      %v934 = vmul.f32 %v918, %v277
      %v935 = vmul.f32 %v919, %v278
      %v936 = vmul.f32 %v920, %v279
      %v937 = vmul.f32 %v921, %v280
      %v938 = vmul.f32 %v922, %v281
      %v939 = vmul.f32 %v923, %v282
      %v940 = vmul.f32 %v924, %v283
      %v941 = vmul.f32 %v925, %v284
      %v942 = vmul.f32 %v926, %v285
      %v943 = vmul.f32 %v927, %v286
      %v944 = vmul.f32 %v928, %v287
      %v945 = vmul.f32 %v929, %v288
      %v946 = vmul.f32 %v930, %v289
      %vm947 = vcmask 24576
      %v948 = vsel %vm947, %v931, 0.0
      %949 = vadd.xlane.f32.xlu0 %v948
      %v950 = vpop.xlane.xlu0 %949
      %v951 = vsel %vm947, %v932, 0.0
      %952 = vadd.xlane.f32.xlu0 %v951
      %v953 = vpop.xlane.xlu0 %952
      %v954 = vsel %vm947, %v933, 0.0
      %955 = vadd.xlane.f32.xlu0 %v954
      %v956 = vpop.xlane.xlu0 %955
      %v957 = vsel %vm947, %v934, 0.0
      %958 = vadd.xlane.f32.xlu0 %v957
      %v959 = vpop.xlane.xlu0 %958
      %v960 = vsel %vm947, %v935, 0.0
      %961 = vadd.xlane.f32.xlu0 %v960
      %v962 = vpop.xlane.xlu0 %961
      %v963 = vsel %vm947, %v936, 0.0
      %964 = vadd.xlane.f32.xlu0 %v963
      %v965 = vpop.xlane.xlu0 %964
      %v966 = vsel %vm947, %v937, 0.0
      %967 = vadd.xlane.f32.xlu0 %v966
      %v968 = vpop.xlane.xlu0 %967
      %v969 = vsel %vm947, %v938, 0.0
      %970 = vadd.xlane.f32.xlu0 %v969
      %v971 = vpop.xlane.xlu0 %970
      %v972 = vsel %vm947, %v939, 0.0
      %973 = vadd.xlane.f32.xlu0 %v972
      %v974 = vpop.xlane.xlu0 %973
      %v975 = vsel %vm947, %v940, 0.0
      %976 = vadd.xlane.f32.xlu0 %v975
      %v977 = vpop.xlane.xlu0 %976
      %v978 = vsel %vm947, %v941, 0.0
      %979 = vadd.xlane.f32.xlu0 %v978
      %v980 = vpop.xlane.xlu0 %979
      %v981 = vsel %vm947, %v942, 0.0
      %982 = vadd.xlane.f32.xlu0 %v981
      %v983 = vpop.xlane.xlu0 %982
      %v984 = vsel %vm947, %v943, 0.0
      %985 = vadd.xlane.f32.xlu0 %v984
      %v986 = vpop.xlane.xlu0 %985
      %v987 = vsel %vm947, %v944, 0.0
      %988 = vadd.xlane.f32.xlu0 %v987
      %v989 = vpop.xlane.xlu0 %988
      %v990 = vsel %vm947, %v945, 0.0
      %991 = vadd.xlane.f32.xlu0 %v990
      %v992 = vpop.xlane.xlu0 %991
      %v993 = vsel %vm947, %v946, 0.0
      %994 = vadd.xlane.f32.xlu0 %v993
      %v995 = vpop.xlane.xlu0 %994
      %v996 = vld [vmem:[%s2] sm:$0x1]
      %v997 = vlaneseq
      %v998 = vshrl.u32 %v997, 7
      %v999 = vsub.s32 0, %v998
      %v1000 = vrot.slane %v950, %v999
      %v1001 = vlaneseq
      %v1002 = vshrl.u32 %v1001, 7
      %v1003 = vsub.s32 0, %v1002
      %v1004 = vrot.slane %v953, %v1003
      %v1005 = vlaneseq
      %v1006 = vshrl.u32 %v1005, 7
      %v1007 = vsub.s32 0, %v1006
      %v1008 = vrot.slane %v956, %v1007
      %v1009 = vlaneseq
      %v1010 = vshrl.u32 %v1009, 7
      %v1011 = vsub.s32 0, %v1010
      %v1012 = vrot.slane %v959, %v1011
      %v1013 = vlaneseq
      %v1014 = vshrl.u32 %v1013, 7
      %v1015 = vsub.s32 0, %v1014
      %v1016 = vrot.slane %v962, %v1015
      %v1017 = vlaneseq
      %v1018 = vshrl.u32 %v1017, 7
      %v1019 = vsub.s32 0, %v1018
      %v1020 = vrot.slane %v965, %v1019
      %v1021 = vlaneseq
      %v1022 = vshrl.u32 %v1021, 7
      %v1023 = vsub.s32 0, %v1022
      %v1024 = vrot.slane %v968, %v1023
      %v1025 = vlaneseq
      %v1026 = vshrl.u32 %v1025, 7
      %v1027 = vsub.s32 0, %v1026
      %v1028 = vrot.slane %v971, %v1027
      %v1029 = vlaneseq
      %v1030 = vshrl.u32 %v1029, 7
      %v1031 = vsub.s32 0, %v1030
      %v1032 = vrot.slane %v974, %v1031
      %v1033 = vlaneseq
      %v1034 = vshrl.u32 %v1033, 7
      %v1035 = vsub.s32 0, %v1034
      %v1036 = vrot.slane %v977, %v1035
      %v1037 = vlaneseq
      %v1038 = vshrl.u32 %v1037, 7
      %v1039 = vsub.s32 0, %v1038
      %v1040 = vrot.slane %v980, %v1039
      %v1041 = vlaneseq
      %v1042 = vshrl.u32 %v1041, 7
      %v1043 = vsub.s32 0, %v1042
      %v1044 = vrot.slane %v983, %v1043
      %v1045 = vlaneseq
      %v1046 = vshrl.u32 %v1045, 7
      %v1047 = vsub.s32 0, %v1046
      %v1048 = vrot.slane %v986, %v1047
      %v1049 = vlaneseq
      %v1050 = vshrl.u32 %v1049, 7
      %v1051 = vsub.s32 0, %v1050
      %v1052 = vrot.slane %v989, %v1051
      %v1053 = vlaneseq
      %v1054 = vshrl.u32 %v1053, 7
      %v1055 = vsub.s32 0, %v1054
      %v1056 = vrot.slane %v992, %v1055
      %v1057 = vlaneseq
      %v1058 = vshrl.u32 %v1057, 7
      %v1059 = vsub.s32 0, %v1058
      %v1060 = vrot.slane %v995, %v1059
      %v1061 = vlaneseq
      %v1062 = vshrl.u32 %v1061, 7
      %v1063 = vsub.s32 0, %v1062
      %v1064 = vrot.slane %v996, %v1063
      %1067 = vbcast.lane.b32.xlu0 %v1064, 256
      %v1068 = vpop.permute.xlu0 %1067
      %v1070 = vmul.f32 %v1000, %v1068
      %v1071 = vmul.f32 %v1004, %v1068
      %v1072 = vmul.f32 %v1008, %v1068
      %v1073 = vmul.f32 %v1012, %v1068
      %v1074 = vmul.f32 %v1016, %v1068
      %v1075 = vmul.f32 %v1020, %v1068
      %v1076 = vmul.f32 %v1024, %v1068
      %v1077 = vmul.f32 %v1028, %v1068
      %v1078 = vmul.f32 %v1032, %v1068
      %v1079 = vmul.f32 %v1036, %v1068
      %v1080 = vmul.f32 %v1040, %v1068
      %v1081 = vmul.f32 %v1044, %v1068
      %v1082 = vmul.f32 %v1048, %v1068
      %v1083 = vmul.f32 %v1052, %v1068
      %v1084 = vmul.f32 %v1056, %v1068
      %v1085 = vmul.f32 %v1060, %v1068
      %v1086 = vadd.f32 %v1070, 0.0
      %v1087 = vadd.f32 %v1071, 0.0
      %v1088 = vadd.f32 %v1072, 0.0
      %v1089 = vadd.f32 %v1073, 0.0
      %v1090 = vadd.f32 %v1074, 0.0
      %v1091 = vadd.f32 %v1075, 0.0
      %v1092 = vadd.f32 %v1076, 0.0
      %v1093 = vadd.f32 %v1077, 0.0
      %v1094 = vadd.f32 %v1078, 0.0
      %v1095 = vadd.f32 %v1079, 0.0
      %v1096 = vadd.f32 %v1080, 0.0
      %v1097 = vadd.f32 %v1081, 0.0
      %v1098 = vadd.f32 %v1082, 0.0
      %v1099 = vadd.f32 %v1083, 0.0
      %v1100 = vadd.f32 %v1084, 0.0
      %v1101 = vadd.f32 %v1085, 0.0
      %v1102 = vld [vmem:[%s2 + $0x2] sm:$0x1]
      %v1103 = vlaneseq
      %v1104 = vshrl.u32 %v1103, 7
      %v1105 = vsub.s32 0, %v1104
      %v1106 = vrot.slane %v1102, %v1105
      %v1107 = vmul.f32 %v293, %v1106
      %v1108 = vmul.f32 %v298, %v1106
      %v1109 = vmul.f32 %v303, %v1106
      %v1110 = vmul.f32 %v308, %v1106
      %v1111 = vmul.f32 %v313, %v1106
      %v1112 = vmul.f32 %v318, %v1106
      %v1113 = vmul.f32 %v323, %v1106
      %v1114 = vmul.f32 %v328, %v1106
      %v1115 = vmul.f32 %v333, %v1106
      %v1116 = vmul.f32 %v338, %v1106
      %v1117 = vmul.f32 %v343, %v1106
      %v1118 = vmul.f32 %v348, %v1106
      %v1119 = vmul.f32 %v353, %v1106
      %v1120 = vmul.f32 %v358, %v1106
      %v1121 = vmul.f32 %v363, %v1106
      %v1122 = vmul.f32 %v368, %v1106
      %v1139 = vlaneseq
      %v1140 = vshrl.u32 %v1139, 7
      %v1141 = vsub.s32 0, %v1140
      %v1142 = vrot.slane %v1107, %v1141
      %1144 = vbcast.lane.b32.xlu0 %v1142, 256
      %v1145 = vpop.permute.xlu0 %1144
      %v1146 = vlaneseq
      %v1147 = vshrl.u32 %v1146, 7
      %v1148 = vsub.s32 0, %v1147
      %v1149 = vrot.slane %v1108, %v1148
      %1151 = vbcast.lane.b32.xlu0 %v1149, 256
      %v1152 = vpop.permute.xlu0 %1151
      %v1153 = vlaneseq
      %v1154 = vshrl.u32 %v1153, 7
      %v1155 = vsub.s32 0, %v1154
      %v1156 = vrot.slane %v1109, %v1155
      %1158 = vbcast.lane.b32.xlu0 %v1156, 256
      %v1159 = vpop.permute.xlu0 %1158
      %v1160 = vlaneseq
      %v1161 = vshrl.u32 %v1160, 7
      %v1162 = vsub.s32 0, %v1161
      %v1163 = vrot.slane %v1110, %v1162
      %1165 = vbcast.lane.b32.xlu0 %v1163, 256
      %v1166 = vpop.permute.xlu0 %1165
      %v1167 = vlaneseq
      %v1168 = vshrl.u32 %v1167, 7
      %v1169 = vsub.s32 0, %v1168
      %v1170 = vrot.slane %v1111, %v1169
      %1172 = vbcast.lane.b32.xlu0 %v1170, 256
      %v1173 = vpop.permute.xlu0 %1172
      %v1174 = vlaneseq
      %v1175 = vshrl.u32 %v1174, 7
      %v1176 = vsub.s32 0, %v1175
      %v1177 = vrot.slane %v1112, %v1176
      %1179 = vbcast.lane.b32.xlu0 %v1177, 256
      %v1180 = vpop.permute.xlu0 %1179
      %v1181 = vlaneseq
      %v1182 = vshrl.u32 %v1181, 7
      %v1183 = vsub.s32 0, %v1182
      %v1184 = vrot.slane %v1113, %v1183
      %1186 = vbcast.lane.b32.xlu0 %v1184, 256
      %v1187 = vpop.permute.xlu0 %1186
      %v1188 = vlaneseq
      %v1189 = vshrl.u32 %v1188, 7
      %v1190 = vsub.s32 0, %v1189
      %v1191 = vrot.slane %v1114, %v1190
      %1193 = vbcast.lane.b32.xlu0 %v1191, 256
      %v1194 = vpop.permute.xlu0 %1193
      %v1195 = vlaneseq
      %v1196 = vshrl.u32 %v1195, 7
      %v1197 = vsub.s32 0, %v1196
      %v1198 = vrot.slane %v1115, %v1197
      %1200 = vbcast.lane.b32.xlu0 %v1198, 256
      %v1201 = vpop.permute.xlu0 %1200
      %v1202 = vlaneseq
      %v1203 = vshrl.u32 %v1202, 7
      %v1204 = vsub.s32 0, %v1203
      %v1205 = vrot.slane %v1116, %v1204
      %1207 = vbcast.lane.b32.xlu0 %v1205, 256
      %v1208 = vpop.permute.xlu0 %1207
      %v1209 = vlaneseq
      %v1210 = vshrl.u32 %v1209, 7
      %v1211 = vsub.s32 0, %v1210
      %v1212 = vrot.slane %v1117, %v1211
      %1214 = vbcast.lane.b32.xlu0 %v1212, 256
      %v1215 = vpop.permute.xlu0 %1214
      %v1216 = vlaneseq
      %v1217 = vshrl.u32 %v1216, 7
      %v1218 = vsub.s32 0, %v1217
      %v1219 = vrot.slane %v1118, %v1218
      %1221 = vbcast.lane.b32.xlu0 %v1219, 256
      %v1222 = vpop.permute.xlu0 %1221
      %v1223 = vlaneseq
      %v1224 = vshrl.u32 %v1223, 7
      %v1225 = vsub.s32 0, %v1224
      %v1226 = vrot.slane %v1119, %v1225
      %1228 = vbcast.lane.b32.xlu0 %v1226, 256
      %v1229 = vpop.permute.xlu0 %1228
      %v1230 = vlaneseq
      %v1231 = vshrl.u32 %v1230, 7
      %v1232 = vsub.s32 0, %v1231
      %v1233 = vrot.slane %v1120, %v1232
      %1235 = vbcast.lane.b32.xlu0 %v1233, 256
      %v1236 = vpop.permute.xlu0 %1235
      %v1237 = vlaneseq
      %v1238 = vshrl.u32 %v1237, 7
      %v1239 = vsub.s32 0, %v1238
      %v1240 = vrot.slane %v1121, %v1239
      %1242 = vbcast.lane.b32.xlu0 %v1240, 256
      %v1243 = vpop.permute.xlu0 %1242
      %v1244 = vlaneseq
      %v1245 = vshrl.u32 %v1244, 7
      %v1246 = vsub.s32 0, %v1245
      %v1247 = vrot.slane %v1122, %v1246
      %1249 = vbcast.lane.b32.xlu0 %v1247, 256
      %v1250 = vpop.permute.xlu0 %1249
      %v1267 = vadd.f32 %v1086, %v1145
      %v1268 = vadd.f32 %v1087, %v1152
      %v1269 = vadd.f32 %v1088, %v1159
      %v1270 = vadd.f32 %v1089, %v1166
      %v1271 = vadd.f32 %v1090, %v1173
      %v1272 = vadd.f32 %v1091, %v1180
      %v1273 = vadd.f32 %v1092, %v1187
      %v1274 = vadd.f32 %v1093, %v1194
      %v1275 = vadd.f32 %v1094, %v1201
      %v1276 = vadd.f32 %v1095, %v1208
      %v1277 = vadd.f32 %v1096, %v1215
      %v1278 = vadd.f32 %v1097, %v1222
      %v1279 = vadd.f32 %v1098, %v1229
      %v1280 = vadd.f32 %v1099, %v1236
      %v1281 = vadd.f32 %v1100, %v1243
      %v1282 = vadd.f32 %v1101, %v1250
      %v1299 = vrot.slane %v274, 1
      %v1300 = vrot.slane %v275, 1
      %v1301 = vrot.slane %v276, 1
      %v1302 = vrot.slane %v277, 1
      %v1303 = vrot.slane %v278, 1
      %v1304 = vrot.slane %v279, 1
      %v1305 = vrot.slane %v280, 1
      %v1306 = vrot.slane %v281, 1
      %v1307 = vrot.slane %v282, 1
      %v1308 = vrot.slane %v283, 1
      %v1309 = vrot.slane %v284, 1
      %v1310 = vrot.slane %v285, 1
      %v1311 = vrot.slane %v286, 1
      %v1312 = vrot.slane %v287, 1
      %v1313 = vrot.slane %v288, 1
      %v1314 = vrot.slane %v289, 1
      %v1331 = vmul.f32 %v915, %v1299
      %v1332 = vmul.f32 %v916, %v1300
      %v1333 = vmul.f32 %v917, %v1301
      %v1334 = vmul.f32 %v918, %v1302
      %v1335 = vmul.f32 %v919, %v1303
      %v1336 = vmul.f32 %v920, %v1304
      %v1337 = vmul.f32 %v921, %v1305
      %v1338 = vmul.f32 %v922, %v1306
      %v1339 = vmul.f32 %v923, %v1307
      %v1340 = vmul.f32 %v924, %v1308
      %v1341 = vmul.f32 %v925, %v1309
      %v1342 = vmul.f32 %v926, %v1310
      %v1343 = vmul.f32 %v927, %v1311
      %v1344 = vmul.f32 %v928, %v1312
      %v1345 = vmul.f32 %v929, %v1313
      %v1346 = vmul.f32 %v930, %v1314
      %v1347 = vsel %vm947, %v1331, 0.0
      %1348 = vadd.xlane.f32.xlu0 %v1347
      %v1349 = vpop.xlane.xlu0 %1348
      %v1350 = vsel %vm947, %v1332, 0.0
      %1351 = vadd.xlane.f32.xlu0 %v1350
      %v1352 = vpop.xlane.xlu0 %1351
      %v1353 = vsel %vm947, %v1333, 0.0
      %1354 = vadd.xlane.f32.xlu0 %v1353
      %v1355 = vpop.xlane.xlu0 %1354
      %v1356 = vsel %vm947, %v1334, 0.0
      %1357 = vadd.xlane.f32.xlu0 %v1356
      %v1358 = vpop.xlane.xlu0 %1357
      %v1359 = vsel %vm947, %v1335, 0.0
      %1360 = vadd.xlane.f32.xlu0 %v1359
      %v1361 = vpop.xlane.xlu0 %1360
      %v1362 = vsel %vm947, %v1336, 0.0
      %1363 = vadd.xlane.f32.xlu0 %v1362
      %v1364 = vpop.xlane.xlu0 %1363
      %v1365 = vsel %vm947, %v1337, 0.0
      %1366 = vadd.xlane.f32.xlu0 %v1365
      %v1367 = vpop.xlane.xlu0 %1366
      %v1368 = vsel %vm947, %v1338, 0.0
      %1369 = vadd.xlane.f32.xlu0 %v1368
      %v1370 = vpop.xlane.xlu0 %1369
      %v1371 = vsel %vm947, %v1339, 0.0
      %1372 = vadd.xlane.f32.xlu0 %v1371
      %v1373 = vpop.xlane.xlu0 %1372
      %v1374 = vsel %vm947, %v1340, 0.0
      %1375 = vadd.xlane.f32.xlu0 %v1374
      %v1376 = vpop.xlane.xlu0 %1375
      %v1377 = vsel %vm947, %v1341, 0.0
      %1378 = vadd.xlane.f32.xlu0 %v1377
      %v1379 = vpop.xlane.xlu0 %1378
      %v1380 = vsel %vm947, %v1342, 0.0
      %1381 = vadd.xlane.f32.xlu0 %v1380
      %v1382 = vpop.xlane.xlu0 %1381
      %v1383 = vsel %vm947, %v1343, 0.0
      %1384 = vadd.xlane.f32.xlu0 %v1383
      %v1385 = vpop.xlane.xlu0 %1384
      %v1386 = vsel %vm947, %v1344, 0.0
      %1387 = vadd.xlane.f32.xlu0 %v1386
      %v1388 = vpop.xlane.xlu0 %1387
      %v1389 = vsel %vm947, %v1345, 0.0
      %1390 = vadd.xlane.f32.xlu0 %v1389
      %v1391 = vpop.xlane.xlu0 %1390
      %v1392 = vsel %vm947, %v1346, 0.0
      %1393 = vadd.xlane.f32.xlu0 %v1392
      %v1394 = vpop.xlane.xlu0 %1393
      %v1395 = vld [vmem:[%s2 + $0x1] sm:$0x1]
      %v1396 = vlaneseq
      %v1397 = vshrl.u32 %v1396, 7
      %v1398 = vsub.s32 0, %v1397
      %v1399 = vrot.slane %v1349, %v1398
      %v1400 = vlaneseq
      %v1401 = vshrl.u32 %v1400, 7
      %v1402 = vsub.s32 0, %v1401
      %v1403 = vrot.slane %v1352, %v1402
      %v1404 = vlaneseq
      %v1405 = vshrl.u32 %v1404, 7
      %v1406 = vsub.s32 0, %v1405
      %v1407 = vrot.slane %v1355, %v1406
      %v1408 = vlaneseq
      %v1409 = vshrl.u32 %v1408, 7
      %v1410 = vsub.s32 0, %v1409
      %v1411 = vrot.slane %v1358, %v1410
      %v1412 = vlaneseq
      %v1413 = vshrl.u32 %v1412, 7
      %v1414 = vsub.s32 0, %v1413
      %v1415 = vrot.slane %v1361, %v1414
      %v1416 = vlaneseq
      %v1417 = vshrl.u32 %v1416, 7
      %v1418 = vsub.s32 0, %v1417
      %v1419 = vrot.slane %v1364, %v1418
      %v1420 = vlaneseq
      %v1421 = vshrl.u32 %v1420, 7
      %v1422 = vsub.s32 0, %v1421
      %v1423 = vrot.slane %v1367, %v1422
      %v1424 = vlaneseq
      %v1425 = vshrl.u32 %v1424, 7
      %v1426 = vsub.s32 0, %v1425
      %v1427 = vrot.slane %v1370, %v1426
      %v1428 = vlaneseq
      %v1429 = vshrl.u32 %v1428, 7
      %v1430 = vsub.s32 0, %v1429
      %v1431 = vrot.slane %v1373, %v1430
      %v1432 = vlaneseq
      %v1433 = vshrl.u32 %v1432, 7
      %v1434 = vsub.s32 0, %v1433
      %v1435 = vrot.slane %v1376, %v1434
      %v1436 = vlaneseq
      %v1437 = vshrl.u32 %v1436, 7
      %v1438 = vsub.s32 0, %v1437
      %v1439 = vrot.slane %v1379, %v1438
      %v1440 = vlaneseq
      %v1441 = vshrl.u32 %v1440, 7
      %v1442 = vsub.s32 0, %v1441
      %v1443 = vrot.slane %v1382, %v1442
      %v1444 = vlaneseq
      %v1445 = vshrl.u32 %v1444, 7
      %v1446 = vsub.s32 0, %v1445
      %v1447 = vrot.slane %v1385, %v1446
      %v1448 = vlaneseq
      %v1449 = vshrl.u32 %v1448, 7
      %v1450 = vsub.s32 0, %v1449
      %v1451 = vrot.slane %v1388, %v1450
      %v1452 = vlaneseq
      %v1453 = vshrl.u32 %v1452, 7
      %v1454 = vsub.s32 0, %v1453
      %v1455 = vrot.slane %v1391, %v1454
      %v1456 = vlaneseq
      %v1457 = vshrl.u32 %v1456, 7
      %v1458 = vsub.s32 0, %v1457
      %v1459 = vrot.slane %v1394, %v1458
      %v1460 = vlaneseq
      %v1461 = vshrl.u32 %v1460, 7
      %v1462 = vsub.s32 0, %v1461
      %v1463 = vrot.slane %v1395, %v1462
      %1466 = vbcast.lane.b32.xlu0 %v1463, 256
      %v1467 = vpop.permute.xlu0 %1466
      %v1469 = vmul.f32 %v1399, %v1467
      %v1470 = vmul.f32 %v1403, %v1467
      %v1471 = vmul.f32 %v1407, %v1467
      %v1472 = vmul.f32 %v1411, %v1467
      %v1473 = vmul.f32 %v1415, %v1467
      %v1474 = vmul.f32 %v1419, %v1467
      %v1475 = vmul.f32 %v1423, %v1467
      %v1476 = vmul.f32 %v1427, %v1467
      %v1477 = vmul.f32 %v1431, %v1467
      %v1478 = vmul.f32 %v1435, %v1467
      %v1479 = vmul.f32 %v1439, %v1467
      %v1480 = vmul.f32 %v1443, %v1467
      %v1481 = vmul.f32 %v1447, %v1467
      %v1482 = vmul.f32 %v1451, %v1467
      %v1483 = vmul.f32 %v1455, %v1467
      %v1484 = vmul.f32 %v1459, %v1467
      %v1485 = vadd.f32 %v1267, %v1469
      %v1486 = vadd.f32 %v1268, %v1470
      %v1487 = vadd.f32 %v1269, %v1471
      %v1488 = vadd.f32 %v1270, %v1472
      %v1489 = vadd.f32 %v1271, %v1473
      %v1490 = vadd.f32 %v1272, %v1474
      %v1491 = vadd.f32 %v1273, %v1475
      %v1492 = vadd.f32 %v1274, %v1476
      %v1493 = vadd.f32 %v1275, %v1477
      %v1494 = vadd.f32 %v1276, %v1478
      %v1495 = vadd.f32 %v1277, %v1479
      %v1496 = vadd.f32 %v1278, %v1480
      %v1497 = vadd.f32 %v1279, %v1481
      %v1498 = vadd.f32 %v1280, %v1482
      %v1499 = vadd.f32 %v1281, %v1483
      %v1500 = vadd.f32 %v1282, %v1484
      %v1501 = vld [vmem:[%s2 + $0x3] sm:$0x1]
      %v1502 = vlaneseq
      %v1503 = vshrl.u32 %v1502, 7
      %v1504 = vsub.s32 0, %v1503
      %v1505 = vrot.slane %v1501, %v1504
      %v1506 = vmul.f32 %v484, %v1505
      %v1507 = vmul.f32 %v488, %v1505
      %v1508 = vmul.f32 %v492, %v1505
      %v1509 = vmul.f32 %v496, %v1505
      %v1510 = vmul.f32 %v500, %v1505
      %v1511 = vmul.f32 %v504, %v1505
      %v1512 = vmul.f32 %v508, %v1505
      %v1513 = vmul.f32 %v512, %v1505
      %v1514 = vmul.f32 %v516, %v1505
      %v1515 = vmul.f32 %v520, %v1505
      %v1516 = vmul.f32 %v524, %v1505
      %v1517 = vmul.f32 %v528, %v1505
      %v1518 = vmul.f32 %v532, %v1505
      %v1519 = vmul.f32 %v536, %v1505
      %v1520 = vmul.f32 %v540, %v1505
      %v1521 = vmul.f32 %v544, %v1505
      %v1538 = vlaneseq
      %v1539 = vshrl.u32 %v1538, 7
      %v1540 = vsub.s32 0, %v1539
      %v1541 = vrot.slane %v1506, %v1540
      %1543 = vbcast.lane.b32.xlu0 %v1541, 256
      %v1544 = vpop.permute.xlu0 %1543
      %v1545 = vlaneseq
      %v1546 = vshrl.u32 %v1545, 7
      %v1547 = vsub.s32 0, %v1546
      %v1548 = vrot.slane %v1507, %v1547
      %1550 = vbcast.lane.b32.xlu0 %v1548, 256
      %v1551 = vpop.permute.xlu0 %1550
      %v1552 = vlaneseq
      %v1553 = vshrl.u32 %v1552, 7
      %v1554 = vsub.s32 0, %v1553
      %v1555 = vrot.slane %v1508, %v1554
      %1557 = vbcast.lane.b32.xlu0 %v1555, 256
      %v1558 = vpop.permute.xlu0 %1557
      %v1559 = vlaneseq
      %v1560 = vshrl.u32 %v1559, 7
      %v1561 = vsub.s32 0, %v1560
      %v1562 = vrot.slane %v1509, %v1561
      %1564 = vbcast.lane.b32.xlu0 %v1562, 256
      %v1565 = vpop.permute.xlu0 %1564
      %v1566 = vlaneseq
      %v1567 = vshrl.u32 %v1566, 7
      %v1568 = vsub.s32 0, %v1567
      %v1569 = vrot.slane %v1510, %v1568
      %1571 = vbcast.lane.b32.xlu0 %v1569, 256
      %v1572 = vpop.permute.xlu0 %1571
      %v1573 = vlaneseq
      %v1574 = vshrl.u32 %v1573, 7
      %v1575 = vsub.s32 0, %v1574
      %v1576 = vrot.slane %v1511, %v1575
      %1578 = vbcast.lane.b32.xlu0 %v1576, 256
      %v1579 = vpop.permute.xlu0 %1578
      %v1580 = vlaneseq
      %v1581 = vshrl.u32 %v1580, 7
      %v1582 = vsub.s32 0, %v1581
      %v1583 = vrot.slane %v1512, %v1582
      %1585 = vbcast.lane.b32.xlu0 %v1583, 256
      %v1586 = vpop.permute.xlu0 %1585
      %v1587 = vlaneseq
      %v1588 = vshrl.u32 %v1587, 7
      %v1589 = vsub.s32 0, %v1588
      %v1590 = vrot.slane %v1513, %v1589
      %1592 = vbcast.lane.b32.xlu0 %v1590, 256
      %v1593 = vpop.permute.xlu0 %1592
      %v1594 = vlaneseq
      %v1595 = vshrl.u32 %v1594, 7
      %v1596 = vsub.s32 0, %v1595
      %v1597 = vrot.slane %v1514, %v1596
      %1599 = vbcast.lane.b32.xlu0 %v1597, 256
      %v1600 = vpop.permute.xlu0 %1599
      %v1601 = vlaneseq
      %v1602 = vshrl.u32 %v1601, 7
      %v1603 = vsub.s32 0, %v1602
      %v1604 = vrot.slane %v1515, %v1603
      %1606 = vbcast.lane.b32.xlu0 %v1604, 256
      %v1607 = vpop.permute.xlu0 %1606
      %v1608 = vlaneseq
      %v1609 = vshrl.u32 %v1608, 7
      %v1610 = vsub.s32 0, %v1609
      %v1611 = vrot.slane %v1516, %v1610
      %1613 = vbcast.lane.b32.xlu0 %v1611, 256
      %v1614 = vpop.permute.xlu0 %1613
      %v1615 = vlaneseq
      %v1616 = vshrl.u32 %v1615, 7
      %v1617 = vsub.s32 0, %v1616
      %v1618 = vrot.slane %v1517, %v1617
      %1620 = vbcast.lane.b32.xlu0 %v1618, 256
      %v1621 = vpop.permute.xlu0 %1620
      %v1622 = vlaneseq
      %v1623 = vshrl.u32 %v1622, 7
      %v1624 = vsub.s32 0, %v1623
      %v1625 = vrot.slane %v1518, %v1624
      %1627 = vbcast.lane.b32.xlu0 %v1625, 256
      %v1628 = vpop.permute.xlu0 %1627
      %v1629 = vlaneseq
      %v1630 = vshrl.u32 %v1629, 7
      %v1631 = vsub.s32 0, %v1630
      %v1632 = vrot.slane %v1519, %v1631
      %1634 = vbcast.lane.b32.xlu0 %v1632, 256
      %v1635 = vpop.permute.xlu0 %1634
      %v1636 = vlaneseq
      %v1637 = vshrl.u32 %v1636, 7
      %v1638 = vsub.s32 0, %v1637
      %v1639 = vrot.slane %v1520, %v1638
      %1641 = vbcast.lane.b32.xlu0 %v1639, 256
      %v1642 = vpop.permute.xlu0 %1641
      %v1643 = vlaneseq
      %v1644 = vshrl.u32 %v1643, 7
      %v1645 = vsub.s32 0, %v1644
      %v1646 = vrot.slane %v1521, %v1645
      %1648 = vbcast.lane.b32.xlu0 %v1646, 256
      %v1649 = vpop.permute.xlu0 %1648
      %v1666 = vadd.f32 %v1485, %v1544
      %v1667 = vadd.f32 %v1486, %v1551
      %v1668 = vadd.f32 %v1487, %v1558
      %v1669 = vadd.f32 %v1488, %v1565
      %v1670 = vadd.f32 %v1489, %v1572
      %v1671 = vadd.f32 %v1490, %v1579
      %v1672 = vadd.f32 %v1491, %v1586
      %v1673 = vadd.f32 %v1492, %v1593
      %v1674 = vadd.f32 %v1493, %v1600
      %v1675 = vadd.f32 %v1494, %v1607
      %v1676 = vadd.f32 %v1495, %v1614
      %v1677 = vadd.f32 %v1496, %v1621
      %v1678 = vadd.f32 %v1497, %v1628
      %v1679 = vadd.f32 %v1498, %v1635
      %v1680 = vadd.f32 %v1499, %v1642
      %v1681 = vadd.f32 %v1500, %v1649
      %v1682 = vld [vmem:[%s3] sm:$0x1]
      %v1684 = vlaneseq
      %v1685 = vshrl.u32 %v1684, 7
      %v1686 = vsub.s32 0, %v1685
      %v1687 = vrot.slane %v1682, %v1686
      %1689 = vbcast.lane.b32.xlu0 %v1687, 256
      %v1690 = vpop.permute.xlu0 %1689
      %v1692 = vadd.f32 %v1666, %v1690
      %v1693 = vadd.f32 %v1667, %v1690
      %v1694 = vadd.f32 %v1668, %v1690
      %v1695 = vadd.f32 %v1669, %v1690
      %v1696 = vadd.f32 %v1670, %v1690
      %v1697 = vadd.f32 %v1671, %v1690
      %v1698 = vadd.f32 %v1672, %v1690
      %v1699 = vadd.f32 %v1673, %v1690
      %v1700 = vadd.f32 %v1674, %v1690
      %v1701 = vadd.f32 %v1675, %v1690
      %v1702 = vadd.f32 %v1676, %v1690
      %v1703 = vadd.f32 %v1677, %v1690
      %v1704 = vadd.f32 %v1678, %v1690
      %v1705 = vadd.f32 %v1679, %v1690
      %v1706 = vadd.f32 %v1680, %v1690
      %v1707 = vadd.f32 %v1681, %v1690
      %v1708 = vmax.f32 %v1692, 0.0
      %v1709 = vmax.f32 %v1693, 0.0
      %v1710 = vmax.f32 %v1694, 0.0
      %v1711 = vmax.f32 %v1695, 0.0
      %v1712 = vmax.f32 %v1696, 0.0
      %v1713 = vmax.f32 %v1697, 0.0
      %v1714 = vmax.f32 %v1698, 0.0
      %v1715 = vmax.f32 %v1699, 0.0
      %v1716 = vmax.f32 %v1700, 0.0
      %v1717 = vmax.f32 %v1701, 0.0
      %v1718 = vmax.f32 %v1702, 0.0
      %v1719 = vmax.f32 %v1703, 0.0
      %v1720 = vmax.f32 %v1704, 0.0
      %v1721 = vmax.f32 %v1705, 0.0
      %v1722 = vmax.f32 %v1706, 0.0
      %v1723 = vmax.f32 %v1707, 0.0
      %v1724 = vrot.slane %v259, 7
      %vm1725 = vcmask 1041409
      %v1726 = vsel %vm1725, %v1724, %v258
      %v1727 = vrot.slane %v260, 6
      %vm1728 = vcmask 1042434
      %v1729 = vsel %vm1728, %v1727, %v1726
      %v1730 = vrot.slane %v261, 5
      %vm1731 = vcmask 1043459
      %v1732 = vsel %vm1731, %v1730, %v1729
      %v1733 = vrot.slane %v262, 4
      %vm1734 = vcmask 1044484
      %v1735 = vsel %vm1734, %v1733, %v1732
      %v1736 = vrot.slane %v263, 3
      %vm1737 = vcmask 1045509
      %v1738 = vsel %vm1737, %v1736, %v1735
      %v1739 = vrot.slane %v264, 2
      %vm1740 = vcmask 1046534
      %v1741 = vsel %vm1740, %v1739, %v1738
      %v1742 = vrot.slane %v265, 1
      %vm1743 = vcmask 1047559
      %v1744 = vsel %vm1743, %v1742, %v1741
      %v1745 = vrot.slane %v267, 7
      %v1746 = vsel %vm1725, %v1745, %v266
      %v1747 = vrot.slane %v268, 6
      %v1748 = vsel %vm1728, %v1747, %v1746
      %v1749 = vrot.slane %v269, 5
      %v1750 = vsel %vm1731, %v1749, %v1748
      %v1751 = vrot.slane %v270, 4
      %v1752 = vsel %vm1734, %v1751, %v1750
      %v1753 = vrot.slane %v271, 3
      %v1754 = vsel %vm1737, %v1753, %v1752
      %v1755 = vrot.slane %v272, 2
      %v1756 = vsel %vm1740, %v1755, %v1754
      %v1757 = vrot.slane %v273, 1
      %v1758 = vsel %vm1743, %v1757, %v1756
      %vm1761 = vcmask 15360
      %1762 = vst.msk [vmem:[%s252] sm:$0xff] %vm1761, %v1744
      %1763 = vst.msk [vmem:[%s252 + $0x8] sm:$0xff] %vm1761, %v1758
      %1780 = vset.pattern.permute.xlu0 0
      %1781 = vperm.xlu0 %1780, %v1708
      %v1782 = vpop.permute.xlu0 %1781
      %1783 = vset.pattern.permute.xlu0 0
      %1784 = vperm.xlu0 %1783, %v1709
      %v1785 = vpop.permute.xlu0 %1784
      %1786 = vset.pattern.permute.xlu0 0
      %1787 = vperm.xlu0 %1786, %v1710
      %v1788 = vpop.permute.xlu0 %1787
      %1789 = vset.pattern.permute.xlu0 0
      %1790 = vperm.xlu0 %1789, %v1711
      %v1791 = vpop.permute.xlu0 %1790
      %1792 = vset.pattern.permute.xlu0 0
      %1793 = vperm.xlu0 %1792, %v1712
      %v1794 = vpop.permute.xlu0 %1793
      %1795 = vset.pattern.permute.xlu0 0
      %1796 = vperm.xlu0 %1795, %v1713
      %v1797 = vpop.permute.xlu0 %1796
      %1798 = vset.pattern.permute.xlu0 0
      %1799 = vperm.xlu0 %1798, %v1714
      %v1800 = vpop.permute.xlu0 %1799
      %1801 = vset.pattern.permute.xlu0 0
      %1802 = vperm.xlu0 %1801, %v1715
      %v1803 = vpop.permute.xlu0 %1802
      %1804 = vset.pattern.permute.xlu0 0
      %1805 = vperm.xlu0 %1804, %v1716
      %v1806 = vpop.permute.xlu0 %1805
      %1807 = vset.pattern.permute.xlu0 0
      %1808 = vperm.xlu0 %1807, %v1717
      %v1809 = vpop.permute.xlu0 %1808
      %1810 = vset.pattern.permute.xlu0 0
      %1811 = vperm.xlu0 %1810, %v1718
      %v1812 = vpop.permute.xlu0 %1811
      %1813 = vset.pattern.permute.xlu0 0
      %1814 = vperm.xlu0 %1813, %v1719
      %v1815 = vpop.permute.xlu0 %1814
      %1816 = vset.pattern.permute.xlu0 0
      %1817 = vperm.xlu0 %1816, %v1720
      %v1818 = vpop.permute.xlu0 %1817
      %1819 = vset.pattern.permute.xlu0 0
      %1820 = vperm.xlu0 %1819, %v1721
      %v1821 = vpop.permute.xlu0 %1820
      %1822 = vset.pattern.permute.xlu0 0
      %1823 = vperm.xlu0 %1822, %v1722
      %v1824 = vpop.permute.xlu0 %1823
      %1825 = vset.pattern.permute.xlu0 0
      %1826 = vperm.xlu0 %1825, %v1723
      %v1827 = vpop.permute.xlu0 %1826
      %v1828 = vlaneseq
      %v1829 = vand.u32 %v1828, 127
      %v1830 = vlaneseq
      %v1831 = vshrl.u32 %v1830, 7
      %v1832 = vsub.s32 %v1829, %v1831
      %v1833 = vrot.slane %v1782, %v1832
      %v1834 = vlaneseq
      %v1835 = vshrl.u32 %v1834, 7
      %v1836 = vsub.s32 %v1829, %v1835
      %v1837 = vrot.slane %v1785, %v1836
      %v1838 = vlaneseq
      %v1839 = vshrl.u32 %v1838, 7
      %v1840 = vsub.s32 %v1829, %v1839
      %v1841 = vrot.slane %v1788, %v1840
      %v1842 = vlaneseq
      %v1843 = vshrl.u32 %v1842, 7
      %v1844 = vsub.s32 %v1829, %v1843
      %v1845 = vrot.slane %v1791, %v1844
      %v1846 = vlaneseq
      %v1847 = vshrl.u32 %v1846, 7
      %v1848 = vsub.s32 %v1829, %v1847
      %v1849 = vrot.slane %v1794, %v1848
      %v1850 = vlaneseq
      %v1851 = vshrl.u32 %v1850, 7
      %v1852 = vsub.s32 %v1829, %v1851
      %v1853 = vrot.slane %v1797, %v1852
      %v1854 = vlaneseq
      %v1855 = vshrl.u32 %v1854, 7
      %v1856 = vsub.s32 %v1829, %v1855
      %v1857 = vrot.slane %v1800, %v1856
      %v1858 = vlaneseq
      %v1859 = vshrl.u32 %v1858, 7
      %v1860 = vsub.s32 %v1829, %v1859
      %v1861 = vrot.slane %v1803, %v1860
      %v1862 = vlaneseq
      %v1863 = vshrl.u32 %v1862, 7
      %v1864 = vsub.s32 %v1829, %v1863
      %v1865 = vrot.slane %v1806, %v1864
      %v1866 = vlaneseq
      %v1867 = vshrl.u32 %v1866, 7
      %v1868 = vsub.s32 %v1829, %v1867
      %v1869 = vrot.slane %v1809, %v1868
      %v1870 = vlaneseq
      %v1871 = vshrl.u32 %v1870, 7
      %v1872 = vsub.s32 %v1829, %v1871
      %v1873 = vrot.slane %v1812, %v1872
      %v1874 = vlaneseq
      %v1875 = vshrl.u32 %v1874, 7
      %v1876 = vsub.s32 %v1829, %v1875
      %v1877 = vrot.slane %v1815, %v1876
      %v1878 = vlaneseq
      %v1879 = vshrl.u32 %v1878, 7
      %v1880 = vsub.s32 %v1829, %v1879
      %v1881 = vrot.slane %v1818, %v1880
      %v1882 = vlaneseq
      %v1883 = vshrl.u32 %v1882, 7
      %v1884 = vsub.s32 %v1829, %v1883
      %v1885 = vrot.slane %v1821, %v1884
      %v1886 = vlaneseq
      %v1887 = vshrl.u32 %v1886, 7
      %v1888 = vsub.s32 %v1829, %v1887
      %v1889 = vrot.slane %v1824, %v1888
      %v1890 = vlaneseq
      %v1891 = vshrl.u32 %v1890, 7
      %v1892 = vsub.s32 %v1829, %v1891
      %v1893 = vrot.slane %v1827, %v1892
      %v1894 = vsel %vm1725, %v1837, %v1833
      %v1895 = vsel %vm1728, %v1841, %v1894
      %v1896 = vsel %vm1731, %v1845, %v1895
      %v1897 = vsel %vm1734, %v1849, %v1896
      %v1898 = vsel %vm1737, %v1853, %v1897
      %v1899 = vsel %vm1740, %v1857, %v1898
      %v1900 = vsel %vm1743, %v1861, %v1899
      %v1901 = vsel %vm1725, %v1869, %v1865
      %v1902 = vsel %vm1728, %v1873, %v1901
      %v1903 = vsel %vm1731, %v1877, %v1902
      %v1904 = vsel %vm1734, %v1881, %v1903
      %v1905 = vsel %vm1737, %v1885, %v1904
      %v1906 = vsel %vm1740, %v1889, %v1905
      %v1907 = vsel %vm1743, %v1893, %v1906
      %vm1910 = vcmask 64512
      %1911 = vst.msk [vmem:[%s257] sm:$0xff] %vm1910, %v1900
      %1912 = vst.msk [vmem:[%s257 + $0x8] sm:$0xff] %vm1910, %v1907
      %p1913 = scmp.lt.s32.totalorder %s17, 1
      %s1914 = scalar_select %p1913, %s17, 1
      %s1915 = smul.addr %s1914, 2
      %s1916 = smul.addr %s1915, 8
      %s1917 = scalar_lea.vmem %s4, %s1916
      %p1918 = scmp.lt.s32.totalorder %s17, 1
      %s1919 = scalar_select %p1918, %s17, 1
      %s1920 = smul.addr %s1919, 2
      %s1921 = smul.addr %s1920, 8
      %s1922 = scalar_lea.vmem %s5, %s1921
      // Predicated region
      $region37: #{tpu_custom_call.1} parent=35 // pred_check
        %p1923 = pneg %p129
      $region38: #{tpu_custom_call.1} parent=35 // pred_check_branch
        %1925 = sbr.rel (%p1923) target = $region40
      $region39: #{tpu_custom_call.1} parent=35 // pred_region
        _
      $region40: #{tpu_custom_call.1} parent=35 // pred_fallthru
        _
      // Predicated region
      $region41: #{tpu_custom_call.1} parent=35 // pred_check
        %p1926 = pneg %p155
      $region42: #{tpu_custom_call.1} parent=35 // pred_check_branch
        %1928 = sbr.rel (%p1926) target = $region44
      $region43: #{tpu_custom_call.1} parent=35 // pred_region
        _
      $region44: #{tpu_custom_call.1} parent=35 // pred_fallthru
        _
    $region36: #{tpu_custom_call.1} parent=5 // pred_fallthru
      _
    %p1929 = scmp.le.s32.totalorder 2, %s12
    // Predicated region
    $region45: #{tpu_custom_call.1} parent=5 // pred_check
      %p1930 = pneg %p1929
    $region46: #{tpu_custom_call.1} parent=5 // pred_check_branch
      %1932 = sbr.rel (%p1930) target = $region48
    $region47: #{tpu_custom_call.1} parent=5 // pred_region
      %s1933 = ssub.s32 %s12, 2
      // Predicated region
      $region49: #{tpu_custom_call.1} parent=47 // pred_check
        %p1934 = pneg %p135
      $region50: #{tpu_custom_call.1} parent=47 // pred_check_branch
        %1936 = sbr.rel (%p1934) target = $region52
      $region51: #{tpu_custom_call.1} parent=47 // pred_region
        %p1937 = scmp.lt.s32.totalorder %s18, 1
        %s1938 = scalar_select %p1937, %s18, 1
        %s1939 = smul.addr %s1938, 2
        %s1940 = smul.addr %s1939, 8
        %s1941 = scalar_lea.vmem %s4, %s1940
      $region52: #{tpu_custom_call.1} parent=47 // pred_fallthru
        _
      // Predicated region
      $region53: #{tpu_custom_call.1} parent=47 // pred_check
        %p1942 = pneg %p161
      $region54: #{tpu_custom_call.1} parent=47 // pred_check_branch
        %1944 = sbr.rel (%p1942) target = $region56
      $region55: #{tpu_custom_call.1} parent=47 // pred_region
        %p1945 = scmp.lt.s32.totalorder %s18, 1
        %s1946 = scalar_select %p1945, %s18, 1
        %s1947 = smul.addr %s1946, 2
        %s1948 = smul.addr %s1947, 8
        %s1949 = scalar_lea.vmem %s5, %s1948
      $region56: #{tpu_custom_call.1} parent=47 // pred_fallthru
        _
    $region48: #{tpu_custom_call.1} parent=5 // pred_fallthru
      _
  $region6: #{tpu_custom_call.1} parent=0 // loop_footer
    %s16 = sadd.s32 1, %s12
  $region7: #{tpu_custom_call.1} parent=0 // loop_footer_branch
    %11 = sbr.rel target = $region3
  $region8: #{tpu_custom_call.1} parent=0 // loop_exit
    _

</llo_original>
